<compile_context>
chip_gen: v6e
topology: v6e:2x2x1
jax: 0.10.0
libtpu: 0.0.40
codegen_flags: <defaults>
</compile_context>

<pallas_src>
import math

import jax
import jax.numpy as jnp
from jax import lax
from jax.experimental import pallas as pl
from jax.experimental.pallas import tpu as pltpu

BN_EPS = 1e-5       # nn.BatchNorm1d default
LANE = 128          # TPU lane width


def _round_up(n, m=LANE):
    return ((n + m - 1) // m) * m


# ----------------------------------------------------------------------------
# shared math helpers (used by both the kernels and the pure-JAX reference so
# numerics are identical; only ops with guaranteed Mosaic lowerings)
# ----------------------------------------------------------------------------
def _gelu_exact(x):
    # PyTorch nn.GELU() default: 0.5*x*(1 + erf(x/sqrt(2))).
    # erf via Abramowitz-Stegun 7.1.26 (~1.5e-7 abs err) with the GELU affine
    # and erf's odd symmetry folded in:
    #   gelu(x) = 0.5*(x + |x|) - 0.5*|x| * poly(t) * exp(-u^2),  u = |x|/sqrt(2)
    # -> no sign/select chain; exp lands on the EUP slot (free vs VALU).
    # TODO(synk): switch to jax.lax.erf if/when its Mosaic lowering is guaranteed.
    a1, a2, a3, a4, a5 = 0.254829592, -0.284496736, 1.421413741, -1.453152027, 1.061405429
    p = 0.3275911
    ax = jnp.abs(x)
    u = 0.7071067811865476 * ax
    t = 1.0 / (1.0 + p * u)
    poly = ((((a5 * t + a4) * t + a3) * t + a2) * t + a1) * t
    return 0.5 * (x + ax) - (0.5 * ax) * (poly * jnp.exp(-u * u))


def _linear(h, w, b):
    # w is bf16 (halved HBM/VMEM bytes, native MXU dtype); activations are cast
    # to bf16 at the MXU input, accumulation stays in f32.
    return jnp.dot(h.astype(w.dtype), w, preferred_element_type=jnp.float32) + b


def _bn_gelu(z, gamma, beta):
    # training-mode BatchNorm1d: biased batch statistics over the batch axis.
    # The full batch lives in one block, so stats match nn.BatchNorm1d exactly
    # (the batch axis must never be tiled across grid blocks).
    mean = jnp.mean(z, axis=0, keepdims=True)
    var = jnp.mean((z - mean) ** 2, axis=0, keepdims=True)
    scale = gamma * lax.rsqrt(var + BN_EPS)        # fold normalize + affine
    shift = beta - mean * scale
    return _gelu_exact(z * scale + shift)          # single FMA per element


def _encoder_math(x, eps, params, n_enc, lat_pad):
    it = iter(params)
    h = x
    for _ in range(n_enc):
        w, b, g, be = next(it), next(it), next(it), next(it)
        h = _bn_gelu(_linear(h, w, b), g, be)
    w, b = next(it), next(it)
    ml = _linear(h, w, b)                          # fused mu|log_var projection
    mu = ml[:, :lat_pad]
    log_var = jnp.minimum(ml[:, lat_pad:], 15.0)   # torch.clamp(max=15.0)
    latent = eps * jnp.exp(0.5 * log_var) + mu     # reparameterization
    return mu, log_var, latent


def _head_math(latent, params, n_hidden, apply_sigmoid):
    it = iter(params)
    h = _linear(latent, next(it), next(it))
    for _ in range(n_hidden):
        w, b, g, be = next(it), next(it), next(it), next(it)
        h = _bn_gelu(_linear(h, w, b), g, be)
    y = _linear(h, next(it), next(it))
    return jax.nn.sigmoid(y) if apply_sigmoid else y


# ----------------------------------------------------------------------------
# kernels
# ----------------------------------------------------------------------------
def _make_encoder_kernel(n_enc, lat_pad, n_params):
    def kernel(*refs):
        x = refs[0][...]
        eps = refs[1][...]
        params = [refs[2 + i][...] for i in range(n_params)]
        mu_ref, lv_ref, lat_ref = refs[2 + n_params:]
        mu, log_var, latent = _encoder_math(x, eps, params, n_enc, lat_pad)
        mu_ref[...] = mu
        lv_ref[...] = log_var
        lat_ref[...] = latent
    return kernel


def _make_heads_kernel(n_hidden, n_params):
    def kernel(*refs):
        latent = refs[0][...]
        params = [refs[1 + i][...] for i in range(n_params)]
        out_ref = refs[1 + n_params]
        y = _head_math(latent, params, n_hidden, apply_sigmoid=False)
        head = pl.program_id(0)            # 0 = decoder, 1 = intrinsic scatter

        @pl.when(head == 0)
        def _():
            out_ref[...] = y

        @pl.when(head == 1)
        def _():
            out_ref[...] = jax.nn.sigmoid(y)
    return kernel


# ----------------------------------------------------------------------------
# parameter construction (deterministic nn.Linear / nn.BatchNorm1d style init,
# zero-padded to lane-dense shapes; matmul weights stored bf16)
# ----------------------------------------------------------------------------
def _uniform(key, shape, bound):
    return jax.random.uniform(key, shape, jnp.float32, -bound, bound)


def _init_linear_padded(key, fan_in, fan_out, in_pad, out_pad):
    kw, kb = jax.random.split(key)
    bound = 1.0 / math.sqrt(fan_in)
    w = jnp.zeros((in_pad, out_pad), jnp.float32)
    w = w.at[:fan_in, :fan_out].set(_uniform(kw, (fan_in, fan_out), bound))
    b = jnp.zeros((1, out_pad), jnp.float32)
    b = b.at[:, :fan_out].set(_uniform(kb, (1, fan_out), bound))
    return w.astype(jnp.bfloat16), b


def _init_bn_padded(fan_out, out_pad):
    # NOTE: padded gamma lanes MUST stay exactly 0 so var=0 lanes (rsqrt(eps))
    # are killed; external checkpoints must be padded the same way.
    gamma = jnp.zeros((1, out_pad), jnp.float32).at[:, :fan_out].set(1.0)
    beta = jnp.zeros((1, out_pad), jnp.float32)
    return gamma, beta


def _init_mu_logvar_padded(key, fan_in, latent, in_pad, lat_pad):
    # two independent nn.Linear inits packed into one (in_pad, 2*lat_pad) weight:
    #   mu -> cols [0, latent);  log_var -> cols [lat_pad, lat_pad + latent)
    kmu, klv = jax.random.split(key)
    bound = 1.0 / math.sqrt(fan_in)
    kw1, kb1 = jax.random.split(kmu)
    kw2, kb2 = jax.random.split(klv)
    w = jnp.zeros((in_pad, 2 * lat_pad), jnp.float32)
    b = jnp.zeros((1, 2 * lat_pad), jnp.float32)
    w = w.at[:fan_in, :latent].set(_uniform(kw1, (fan_in, latent), bound))
    b = b.at[:, :latent].set(_uniform(kb1, (1, latent), bound))
    w = w.at[:fan_in, lat_pad:lat_pad + latent].set(_uniform(kw2, (fan_in, latent), bound))
    b = b.at[:, lat_pad:lat_pad + latent].set(_uniform(kb2, (1, latent), bound))
    return w.astype(jnp.bfloat16), b


def init_scatter_vae_params(key, input_dim, latent_dim, intermediate_layers):
    dims = [input_dim] + list(intermediate_layers)
    pdims = [_round_up(d) for d in dims]
    in_pad = pdims[0]
    lat_pad = _round_up(latent_dim)
    flip = list(intermediate_layers[::-1])
    pflip = [_round_up(d) for d in flip]

    keys = iter(jax.random.split(key, 256))

    # encoder: [Linear -> BN -> GELU] chain + fused mu/log_var projection
    enc_params = []
    for i in range(len(intermediate_layers)):
        w, b = _init_linear_padded(next(keys), dims[i], dims[i + 1], pdims[i], pdims[i + 1])
        g, be = _init_bn_padded(dims[i + 1], pdims[i + 1])
        enc_params += [w, b, g, be]
    w, b = _init_mu_logvar_padded(next(keys), intermediate_layers[-1], latent_dim,
                                  pdims[-1], lat_pad)
    enc_params += [w, b]

    # decoder (head 0) and intrinsic-scatter (head 1) mirror each other
    # layer-for-layer; stack each layer's params along a leading axis of 2.
    def one_head(kseq):
        ps = []
        w, b = _init_linear_padded(next(kseq), latent_dim, flip[0], lat_pad, pflip[0])
        ps += [w, b]
        for i in range(len(flip) - 1):
            w, b = _init_linear_padded(next(kseq), flip[i], flip[i + 1], pflip[i], pflip[i + 1])
            g, be = _init_bn_padded(flip[i + 1], pflip[i + 1])
            ps += [w, b, g, be]
        w, b = _init_linear_padded(next(kseq), flip[-1], input_dim, pflip[-1], in_pad)
        ps += [w, b]
        return ps

    dec_params = one_head(keys)
    sct_params = one_head(keys)
    head_params = [jnp.stack([d, s], axis=0) for d, s in zip(dec_params, sct_params)]

    config = dict(
        input_dim=input_dim, latent_dim=latent_dim,
        input_pad=in_pad, latent_pad=lat_pad,
        n_enc=len(intermediate_layers), n_hidden=len(flip) - 1,
    )
    return enc_params, head_params, config


# ----------------------------------------------------------------------------
# forward builder — two pallas_calls (encoder+reparam; 2-way-parallel heads)
# ----------------------------------------------------------------------------
def _vmem_budget_bytes():
    # Generation-aware VMEM cap: ~75% of physical per-core VMEM (v5e/v6e:
    # 128 MiB -> ~96 MiB, v7x: 64 MiB -> ~48 MiB), leaving headroom for Mosaic
    # internal scratch and IO buffers.
    try:
        cap = int(pltpu.get_tpu_info().vmem_capacity_bytes)
    except Exception:
        cap = 64 * 2 ** 20
    return int(cap * 3 // 4)


def build_scatter_vae_forward(config):
    input_dim = config["input_dim"]
    latent_dim = config["latent_dim"]
    in_pad = config["input_pad"]
    lat_pad = config["latent_pad"]
    n_enc = config["n_enc"]
    n_hidden = config["n_hidden"]
    vmem_budget = _vmem_budget_bytes()

    def _nbytes(a):
        return math.prod(a.shape) * jnp.dtype(a.dtype).itemsize

    vmem_spec = pl.BlockSpec(memory_space=pltpu.MemorySpace.VMEM)

    @jax.jit
    def forward(enc_params, head_params, x, x_ivar, eps):
        B = x.shape[0]
        x_pad = jnp.pad(x.astype(jnp.float32), ((0, 0), (0, in_pad - input_dim)))
        eps_pad = jnp.pad(eps.astype(jnp.float32), ((0, 0), (0, lat_pad - latent_dim)))

        # ---- call 1: encoder chain + fused mu/log_var + reparameterization ----
        enc_args = (x_pad, eps_pad, *enc_params)
        enc_out_shape = (
            jax.ShapeDtypeStruct((B, lat_pad), jnp.float32),   # mu (padded)
            jax.ShapeDtypeStruct((B, lat_pad), jnp.float32),   # log_var (padded)
            jax.ShapeDtypeStruct((B, lat_pad), jnp.float32),   # latent (padded)
        )
        enc_w = [w for w in enc_params if w.ndim == 2 and w.shape[0] > 1]
        enc_flops = 2 * B * sum(w.shape[0] * w.shape[1] for w in enc_w)
        enc_trans = B * (sum(enc_params[4 * i].shape[1] for i in range(n_enc)) + lat_pad)
        enc_bytes = (sum(_nbytes(a) for a in enc_args)
                     + sum(math.prod(s.shape) * 4 for s in enc_out_shape))
        enc_vmem = int(min(max(4 * enc_bytes, 16 * 2 ** 20), vmem_budget))

        mu_p, lv_p, latent = pl.pallas_call(
            _make_encoder_kernel(n_enc, lat_pad, len(enc_params)),
            out_shape=enc_out_shape,
            in_specs=[vmem_spec] * len(enc_args),
            out_specs=(vmem_spec, vmem_spec, vmem_spec),
            compiler_params=pltpu.CompilerParams(vmem_limit_bytes=enc_vmem),
            cost_estimate=pl.CostEstimate(flops=int(enc_flops),
                                          transcendentals=int(enc_trans),
                                          bytes_accessed=int(enc_bytes)),
        )(*enc_args)

        # ---- call 2: decoder + scatter heads as a size-2 "parallel" grid ----
        head_in_specs = [pl.BlockSpec((B, lat_pad), lambda h: (0, 0))]
        for prm in head_params:
            head_in_specs.append(
                pl.BlockSpec((None,) + tuple(prm.shape[1:]), lambda h: (h, 0, 0)))
        head_out_spec = pl.BlockSpec((None, B, in_pad), lambda h: (h, 0, 0))

        head_w = [w for w in head_params if w.ndim == 3 and w.shape[1] > 1]
        head_flops = 2 * B * sum(w.shape[0] * w.shape[1] * w.shape[2] for w in head_w)
        head_trans = B * in_pad + 2 * B * sum(
            head_params[2 + 4 * i].shape[2] for i in range(n_hidden))
        head_bytes = (B * lat_pad * 4 + sum(_nbytes(p) for p in head_params)
                      + 2 * B * in_pad * 4)
        head_vmem = int(min(max(4 * head_bytes, 16 * 2 ** 20), vmem_budget))

        out_stacked = pl.pallas_call(
            _make_heads_kernel(n_hidden, len(head_params)),
            out_shape=jax.ShapeDtypeStruct((2, B, in_pad), jnp.float32),
            grid=(2,),
            in_specs=head_in_specs,
            out_specs=head_out_spec,
            compiler_params=pltpu.CompilerParams(
                dimension_semantics=("parallel",),
                vmem_limit_bytes=head_vmem),
            cost_estimate=pl.CostEstimate(flops=int(head_flops),
                                          transcendentals=int(head_trans),
                                          bytes_accessed=int(head_bytes)),
        )(latent, *head_params)

        # slice the padded lanes back off
        mu = mu_p[:, :latent_dim]
        log_var = lv_p[:, :latent_dim]
        xhat = out_stacked[0, :, :input_dim]
        shat = out_stacked[1, :, :input_dim]
        return x, x_ivar, mu, log_var, xhat, shat

    return forward


# ----------------------------------------------------------------------------
# pure-JAX reference (identical math, same padded/stacked params)
# ----------------------------------------------------------------------------
def reference_forward(enc_params, head_params, config, x, x_ivar, eps):
    input_dim = config["input_dim"]
    latent_dim = config["latent_dim"]
    in_pad = config["input_pad"]
    lat_pad = config["latent_pad"]
    x_pad = jnp.pad(x.astype(jnp.float32), ((0, 0), (0, in_pad - input_dim)))
    eps_pad = jnp.pad(eps.astype(jnp.float32), ((0, 0), (0, lat_pad - latent_dim)))
    mu, lv, latent = _encoder_math(x_pad, eps_pad, list(enc_params),
                                   config["n_enc"], lat_pad)
    dec_params = [p[0] for p in head_params]
    sct_params = [p[1] for p in head_params]
    xhat = _head_math(latent, dec_params, config["n_hidden"], apply_sigmoid=False)
    shat = _head_math(latent, sct_params, config["n_hidden"], apply_sigmoid=True)
    return (x, x_ivar, mu[:, :latent_dim], lv[:, :latent_dim],
            xhat[:, :input_dim], shat[:, :input_dim])


# ----------------------------------------------------------------------------
if __name__ == "__main__":
    # Small shapes consistent with the module (scaled down from 4170/[2085..100]/10).
    # Production note: batch >=128 (256 on v6e/v7x) is the single biggest
    # throughput lever (MXU M-dim occupancy); the kernels are batch-agnostic,
    # B=8 just keeps the demo tiny.
    B = 8
    INPUT_DIM = 256
    LATENT_DIM = 8
    INTERMEDIATE = [128, 64, 32]

    key = jax.random.PRNGKey(0)
    k_params, k_x, k_ivar, k_eps = jax.random.split(key, 4)

    enc_params, head_params, config = init_scatter_vae_params(
        k_params, INPUT_DIM, LATENT_DIM, INTERMEDIATE)
    forward = build_scatter_vae_forward(config)

    x = jax.random.normal(k_x, (B, INPUT_DIM), jnp.float32)
    # forward() is fed ivar**(-0.5) in the training loop; any positive array works
    x_ivar = jax.random.uniform(k_ivar, (B, INPUT_DIM), jnp.float32, 0.5, 2.0)
    # eps = torch.randn_like(sig): generated in glue, consumed by in-kernel reparam
    eps = jax.random.normal(k_eps, (B, LATENT_DIM), jnp.float32)

    out = jax.block_until_ready(forward(enc_params, head_params, x, x_ivar, eps))
    x_o, ivar_o, mu, log_var, xhat, shat = out

    assert x_o.shape == (B, INPUT_DIM) and ivar_o.shape == (B, INPUT_DIM)
    assert mu.shape == (B, LATENT_DIM) and log_var.shape == (B, LATENT_DIM)
    assert xhat.shape == (B, INPUT_DIM) and shat.shape == (B, INPUT_DIM)
    assert bool(jnp.all(jnp.isfinite(mu))) and bool(jnp.all(jnp.isfinite(log_var)))
    assert bool(jnp.all(jnp.isfinite(xhat))) and bool(jnp.all(jnp.isfinite(shat)))
    assert bool(jnp.all((shat >= 0.0) & (shat <= 1.0)))   # sigmoid output range
    assert bool(jnp.all(log_var <= 15.0))                 # clamp(max=15.0)

    # cross-check the fused kernels against the pure-JAX reference (same math)
    ref = reference_forward(enc_params, head_params, config, x, x_ivar, eps)
    for got, want in zip((mu, log_var, xhat, shat), ref[2:]):
        assert bool(jnp.allclose(got, want, rtol=2e-2, atol=2e-2)), (
            "fused kernel diverged from reference")

    print("KERNEL_OK")
</pallas_src>

<mosaic_0001>
module attributes {stable_mosaic.version = 11 : i64} {
  func.func @kernel(%arg0: memref<8x256xf32, #tpu.memory_space<vmem>>, %arg1: memref<8x128xf32, #tpu.memory_space<vmem>>, %arg2: memref<256x128xbf16, #tpu.memory_space<vmem>>, %arg3: memref<1x128xf32, #tpu.memory_space<vmem>>, %arg4: memref<1x128xf32, #tpu.memory_space<vmem>>, %arg5: memref<1x128xf32, #tpu.memory_space<vmem>>, %arg6: memref<128x128xbf16, #tpu.memory_space<vmem>>, %arg7: memref<1x128xf32, #tpu.memory_space<vmem>>, %arg8: memref<1x128xf32, #tpu.memory_space<vmem>>, %arg9: memref<1x128xf32, #tpu.memory_space<vmem>>, %arg10: memref<128x128xbf16, #tpu.memory_space<vmem>>, %arg11: memref<1x128xf32, #tpu.memory_space<vmem>>, %arg12: memref<1x128xf32, #tpu.memory_space<vmem>>, %arg13: memref<1x128xf32, #tpu.memory_space<vmem>>, %arg14: memref<128x256xbf16, #tpu.memory_space<vmem>>, %arg15: memref<1x256xf32, #tpu.memory_space<vmem>>, %arg16: memref<8x128xf32, #tpu.memory_space<vmem>>, %arg17: memref<8x128xf32, #tpu.memory_space<vmem>>, %arg18: memref<8x128xf32, #tpu.memory_space<vmem>>) attributes {dimension_semantics = [], scalar_prefetch = 0 : i64, scratch_operands = 0 : i64, tpu.core_type = #tpu.core_type<tc>} {
    %c0 = arith.constant 0 : index
    %c0_0 = arith.constant 0 : index
    %0 = vector.load %arg0[%c0, %c0_0] : memref<8x256xf32, #tpu.memory_space<vmem>>, vector<8x256xf32>
    %c0_1 = arith.constant 0 : index
    %c0_2 = arith.constant 0 : index
    %1 = vector.load %arg1[%c0_1, %c0_2] : memref<8x128xf32, #tpu.memory_space<vmem>>, vector<8x128xf32>
    %c0_3 = arith.constant 0 : index
    %c0_4 = arith.constant 0 : index
    %2 = vector.load %arg2[%c0_3, %c0_4] : memref<256x128xbf16, #tpu.memory_space<vmem>>, vector<256x128xbf16>
    %c0_5 = arith.constant 0 : index
    %c0_6 = arith.constant 0 : index
    %3 = vector.load %arg3[%c0_5, %c0_6] : memref<1x128xf32, #tpu.memory_space<vmem>>, vector<1x128xf32>
    %c0_7 = arith.constant 0 : index
    %c0_8 = arith.constant 0 : index
    %4 = vector.load %arg4[%c0_7, %c0_8] : memref<1x128xf32, #tpu.memory_space<vmem>>, vector<1x128xf32>
    %c0_9 = arith.constant 0 : index
    %c0_10 = arith.constant 0 : index
    %5 = vector.load %arg5[%c0_9, %c0_10] : memref<1x128xf32, #tpu.memory_space<vmem>>, vector<1x128xf32>
    %c0_11 = arith.constant 0 : index
    %c0_12 = arith.constant 0 : index
    %6 = vector.load %arg6[%c0_11, %c0_12] : memref<128x128xbf16, #tpu.memory_space<vmem>>, vector<128x128xbf16>
    %c0_13 = arith.constant 0 : index
    %c0_14 = arith.constant 0 : index
    %7 = vector.load %arg7[%c0_13, %c0_14] : memref<1x128xf32, #tpu.memory_space<vmem>>, vector<1x128xf32>
    %c0_15 = arith.constant 0 : index
    %c0_16 = arith.constant 0 : index
    %8 = vector.load %arg8[%c0_15, %c0_16] : memref<1x128xf32, #tpu.memory_space<vmem>>, vector<1x128xf32>
    %c0_17 = arith.constant 0 : index
    %c0_18 = arith.constant 0 : index
    %9 = vector.load %arg9[%c0_17, %c0_18] : memref<1x128xf32, #tpu.memory_space<vmem>>, vector<1x128xf32>
    %c0_19 = arith.constant 0 : index
    %c0_20 = arith.constant 0 : index
    %10 = vector.load %arg10[%c0_19, %c0_20] : memref<128x128xbf16, #tpu.memory_space<vmem>>, vector<128x128xbf16>
    %c0_21 = arith.constant 0 : index
    %c0_22 = arith.constant 0 : index
    %11 = vector.load %arg11[%c0_21, %c0_22] : memref<1x128xf32, #tpu.memory_space<vmem>>, vector<1x128xf32>
    %c0_23 = arith.constant 0 : index
    %c0_24 = arith.constant 0 : index
    %12 = vector.load %arg12[%c0_23, %c0_24] : memref<1x128xf32, #tpu.memory_space<vmem>>, vector<1x128xf32>
    %c0_25 = arith.constant 0 : index
    %c0_26 = arith.constant 0 : index
    %13 = vector.load %arg13[%c0_25, %c0_26] : memref<1x128xf32, #tpu.memory_space<vmem>>, vector<1x128xf32>
    %c0_27 = arith.constant 0 : index
    %c0_28 = arith.constant 0 : index
    %14 = vector.load %arg14[%c0_27, %c0_28] : memref<128x256xbf16, #tpu.memory_space<vmem>>, vector<128x256xbf16>
    %c0_29 = arith.constant 0 : index
    %c0_30 = arith.constant 0 : index
    %15 = vector.load %arg15[%c0_29, %c0_30] : memref<1x256xf32, #tpu.memory_space<vmem>>, vector<1x256xf32>
    %16 = arith.truncf %0 : vector<8x256xf32> to vector<8x256xbf16>
    %cst = arith.constant dense<0.000000e+00> : vector<8x128xf32>
    %17 = tpu.matmul %16, %2, %cst {dimension_numbers = #tpu.dot_dimension_numbers<[1], [0], [0], [1], [0, 0, 1, 1], [], []>} : vector<8x256xbf16>, vector<256x128xbf16>, vector<8x128xf32> -> vector<8x128xf32>
    %18 = vector.broadcast %3 : vector<1x128xf32> to vector<8x128xf32>
    %19 = arith.addf %17, %18 : vector<8x128xf32>
    %cst_31 = arith.constant dense<0.000000e+00> : vector<128xf32>
    %20 = vector.multi_reduction <add>, %19, %cst_31 [0] : vector<8x128xf32> to vector<128xf32>
    %21 = vector.shape_cast %20 : vector<128xf32> to vector<1x128xf32>
    %cst_32 = arith.constant 8.000000e+00 : f32
    %22 = vector.broadcast %cst_32 : f32 to vector<1x128xf32>
    %23 = arith.divf %21, %22 : vector<1x128xf32>
    %24 = vector.broadcast %23 : vector<1x128xf32> to vector<8x128xf32>
    %25 = arith.subf %19, %24 : vector<8x128xf32>
    %26 = arith.mulf %25, %25 : vector<8x128xf32>
    %cst_33 = arith.constant dense<0.000000e+00> : vector<128xf32>
    %27 = vector.multi_reduction <add>, %26, %cst_33 [0] : vector<8x128xf32> to vector<128xf32>
    %28 = vector.shape_cast %27 : vector<128xf32> to vector<1x128xf32>
    %cst_34 = arith.constant 8.000000e+00 : f32
    %29 = vector.broadcast %cst_34 : f32 to vector<1x128xf32>
    %30 = arith.divf %28, %29 : vector<1x128xf32>
    %cst_35 = arith.constant 9.99999974E-6 : f32
    %31 = vector.broadcast %cst_35 : f32 to vector<1x128xf32>
    %32 = arith.addf %30, %31 : vector<1x128xf32>
    %33 = math.rsqrt %32 : vector<1x128xf32>
    %34 = arith.mulf %4, %33 : vector<1x128xf32>
    %35 = arith.mulf %23, %34 : vector<1x128xf32>
    %36 = arith.subf %5, %35 : vector<1x128xf32>
    %37 = vector.broadcast %34 : vector<1x128xf32> to vector<8x128xf32>
    %38 = arith.mulf %19, %37 : vector<8x128xf32>
    %39 = vector.broadcast %36 : vector<1x128xf32> to vector<8x128xf32>
    %40 = arith.addf %38, %39 : vector<8x128xf32>
    %41 = math.absf %40 : vector<8x128xf32>
    %cst_36 = arith.constant 0.707106769 : f32
    %42 = vector.broadcast %cst_36 : f32 to vector<8x128xf32>
    %43 = arith.mulf %42, %41 : vector<8x128xf32>
    %cst_37 = arith.constant 0.327591091 : f32
    %44 = vector.broadcast %cst_37 : f32 to vector<8x128xf32>
    %45 = arith.mulf %44, %43 : vector<8x128xf32>
    %cst_38 = arith.constant 1.000000e+00 : f32
    %46 = vector.broadcast %cst_38 : f32 to vector<8x128xf32>
    %47 = arith.addf %46, %45 : vector<8x128xf32>
    %cst_39 = arith.constant 1.000000e+00 : f32
    %48 = vector.broadcast %cst_39 : f32 to vector<8x128xf32>
    %49 = arith.divf %48, %47 : vector<8x128xf32>
    %cst_40 = arith.constant 1.06140542 : f32
    %50 = vector.broadcast %cst_40 : f32 to vector<8x128xf32>
    %51 = arith.mulf %50, %49 : vector<8x128xf32>
    %cst_41 = arith.constant -1.45315206 : f32
    %52 = vector.broadcast %cst_41 : f32 to vector<8x128xf32>
    %53 = arith.addf %51, %52 : vector<8x128xf32>
    %54 = arith.mulf %53, %49 : vector<8x128xf32>
    %cst_42 = arith.constant 1.42141378 : f32
    %55 = vector.broadcast %cst_42 : f32 to vector<8x128xf32>
    %56 = arith.addf %54, %55 : vector<8x128xf32>
    %57 = arith.mulf %56, %49 : vector<8x128xf32>
    %cst_43 = arith.constant -0.284496725 : f32
    %58 = vector.broadcast %cst_43 : f32 to vector<8x128xf32>
    %59 = arith.addf %57, %58 : vector<8x128xf32>
    %60 = arith.mulf %59, %49 : vector<8x128xf32>
    %cst_44 = arith.constant 0.254829586 : f32
    %61 = vector.broadcast %cst_44 : f32 to vector<8x128xf32>
    %62 = arith.addf %60, %61 : vector<8x128xf32>
    %63 = arith.mulf %62, %49 : vector<8x128xf32>
    %64 = arith.addf %40, %41 : vector<8x128xf32>
    %cst_45 = arith.constant 5.000000e-01 : f32
    %65 = vector.broadcast %cst_45 : f32 to vector<8x128xf32>
    %66 = arith.mulf %65, %64 : vector<8x128xf32>
    %cst_46 = arith.constant 5.000000e-01 : f32
    %67 = vector.broadcast %cst_46 : f32 to vector<8x128xf32>
    %68 = arith.mulf %67, %41 : vector<8x128xf32>
    %cst_47 = arith.constant 0.000000e+00 : f32
    %69 = vector.broadcast %cst_47 : f32 to vector<8x128xf32>
    %70 = arith.subf %69, %43 : vector<8x128xf32>
    %71 = arith.mulf %70, %43 : vector<8x128xf32>
    %72 = math.exp %71 : vector<8x128xf32>
    %73 = arith.mulf %63, %72 : vector<8x128xf32>
    %74 = arith.mulf %68, %73 : vector<8x128xf32>
    %75 = arith.subf %66, %74 : vector<8x128xf32>
    %76 = arith.truncf %75 : vector<8x128xf32> to vector<8x128xbf16>
    %cst_48 = arith.constant dense<0.000000e+00> : vector<8x128xf32>
    %77 = tpu.matmul %76, %6, %cst_48 {dimension_numbers = #tpu.dot_dimension_numbers<[1], [0], [0], [1], [0, 0, 1, 1], [], []>} : vector<8x128xbf16>, vector<128x128xbf16>, vector<8x128xf32> -> vector<8x128xf32>
    %78 = vector.broadcast %7 : vector<1x128xf32> to vector<8x128xf32>
    %79 = arith.addf %77, %78 : vector<8x128xf32>
    %cst_49 = arith.constant dense<0.000000e+00> : vector<128xf32>
    %80 = vector.multi_reduction <add>, %79, %cst_49 [0] : vector<8x128xf32> to vector<128xf32>
    %81 = vector.shape_cast %80 : vector<128xf32> to vector<1x128xf32>
    %cst_50 = arith.constant 8.000000e+00 : f32
    %82 = vector.broadcast %cst_50 : f32 to vector<1x128xf32>
    %83 = arith.divf %81, %82 : vector<1x128xf32>
    %84 = vector.broadcast %83 : vector<1x128xf32> to vector<8x128xf32>
    %85 = arith.subf %79, %84 : vector<8x128xf32>
    %86 = arith.mulf %85, %85 : vector<8x128xf32>
    %cst_51 = arith.constant dense<0.000000e+00> : vector<128xf32>
    %87 = vector.multi_reduction <add>, %86, %cst_51 [0] : vector<8x128xf32> to vector<128xf32>
    %88 = vector.shape_cast %87 : vector<128xf32> to vector<1x128xf32>
    %cst_52 = arith.constant 8.000000e+00 : f32
    %89 = vector.broadcast %cst_52 : f32 to vector<1x128xf32>
    %90 = arith.divf %88, %89 : vector<1x128xf32>
    %cst_53 = arith.constant 9.99999974E-6 : f32
    %91 = vector.broadcast %cst_53 : f32 to vector<1x128xf32>
    %92 = arith.addf %90, %91 : vector<1x128xf32>
    %93 = math.rsqrt %92 : vector<1x128xf32>
    %94 = arith.mulf %8, %93 : vector<1x128xf32>
    %95 = arith.mulf %83, %94 : vector<1x128xf32>
    %96 = arith.subf %9, %95 : vector<1x128xf32>
    %97 = vector.broadcast %94 : vector<1x128xf32> to vector<8x128xf32>
    %98 = arith.mulf %79, %97 : vector<8x128xf32>
    %99 = vector.broadcast %96 : vector<1x128xf32> to vector<8x128xf32>
    %100 = arith.addf %98, %99 : vector<8x128xf32>
    %101 = math.absf %100 : vector<8x128xf32>
    %cst_54 = arith.constant 0.707106769 : f32
    %102 = vector.broadcast %cst_54 : f32 to vector<8x128xf32>
    %103 = arith.mulf %102, %101 : vector<8x128xf32>
    %cst_55 = arith.constant 0.327591091 : f32
    %104 = vector.broadcast %cst_55 : f32 to vector<8x128xf32>
    %105 = arith.mulf %104, %103 : vector<8x128xf32>
    %cst_56 = arith.constant 1.000000e+00 : f32
    %106 = vector.broadcast %cst_56 : f32 to vector<8x128xf32>
    %107 = arith.addf %106, %105 : vector<8x128xf32>
    %cst_57 = arith.constant 1.000000e+00 : f32
    %108 = vector.broadcast %cst_57 : f32 to vector<8x128xf32>
    %109 = arith.divf %108, %107 : vector<8x128xf32>
    %cst_58 = arith.constant 1.06140542 : f32
    %110 = vector.broadcast %cst_58 : f32 to vector<8x128xf32>
    %111 = arith.mulf %110, %109 : vector<8x128xf32>
    %cst_59 = arith.constant -1.45315206 : f32
    %112 = vector.broadcast %cst_59 : f32 to vector<8x128xf32>
    %113 = arith.addf %111, %112 : vector<8x128xf32>
    %114 = arith.mulf %113, %109 : vector<8x128xf32>
    %cst_60 = arith.constant 1.42141378 : f32
    %115 = vector.broadcast %cst_60 : f32 to vector<8x128xf32>
    %116 = arith.addf %114, %115 : vector<8x128xf32>
    %117 = arith.mulf %116, %109 : vector<8x128xf32>
    %cst_61 = arith.constant -0.284496725 : f32
    %118 = vector.broadcast %cst_61 : f32 to vector<8x128xf32>
    %119 = arith.addf %117, %118 : vector<8x128xf32>
    %120 = arith.mulf %119, %109 : vector<8x128xf32>
    %cst_62 = arith.constant 0.254829586 : f32
    %121 = vector.broadcast %cst_62 : f32 to vector<8x128xf32>
    %122 = arith.addf %120, %121 : vector<8x128xf32>
    %123 = arith.mulf %122, %109 : vector<8x128xf32>
    %124 = arith.addf %100, %101 : vector<8x128xf32>
    %cst_63 = arith.constant 5.000000e-01 : f32
    %125 = vector.broadcast %cst_63 : f32 to vector<8x128xf32>
    %126 = arith.mulf %125, %124 : vector<8x128xf32>
    %cst_64 = arith.constant 5.000000e-01 : f32
    %127 = vector.broadcast %cst_64 : f32 to vector<8x128xf32>
    %128 = arith.mulf %127, %101 : vector<8x128xf32>
    %cst_65 = arith.constant 0.000000e+00 : f32
    %129 = vector.broadcast %cst_65 : f32 to vector<8x128xf32>
    %130 = arith.subf %129, %103 : vector<8x128xf32>
    %131 = arith.mulf %130, %103 : vector<8x128xf32>
    %132 = math.exp %131 : vector<8x128xf32>
    %133 = arith.mulf %123, %132 : vector<8x128xf32>
    %134 = arith.mulf %128, %133 : vector<8x128xf32>
    %135 = arith.subf %126, %134 : vector<8x128xf32>
    %136 = arith.truncf %135 : vector<8x128xf32> to vector<8x128xbf16>
    %cst_66 = arith.constant dense<0.000000e+00> : vector<8x128xf32>
    %137 = tpu.matmul %136, %10, %cst_66 {dimension_numbers = #tpu.dot_dimension_numbers<[1], [0], [0], [1], [0, 0, 1, 1], [], []>} : vector<8x128xbf16>, vector<128x128xbf16>, vector<8x128xf32> -> vector<8x128xf32>
    %138 = vector.broadcast %11 : vector<1x128xf32> to vector<8x128xf32>
    %139 = arith.addf %137, %138 : vector<8x128xf32>
    %cst_67 = arith.constant dense<0.000000e+00> : vector<128xf32>
    %140 = vector.multi_reduction <add>, %139, %cst_67 [0] : vector<8x128xf32> to vector<128xf32>
    %141 = vector.shape_cast %140 : vector<128xf32> to vector<1x128xf32>
    %cst_68 = arith.constant 8.000000e+00 : f32
    %142 = vector.broadcast %cst_68 : f32 to vector<1x128xf32>
    %143 = arith.divf %141, %142 : vector<1x128xf32>
    %144 = vector.broadcast %143 : vector<1x128xf32> to vector<8x128xf32>
    %145 = arith.subf %139, %144 : vector<8x128xf32>
    %146 = arith.mulf %145, %145 : vector<8x128xf32>
    %cst_69 = arith.constant dense<0.000000e+00> : vector<128xf32>
    %147 = vector.multi_reduction <add>, %146, %cst_69 [0] : vector<8x128xf32> to vector<128xf32>
    %148 = vector.shape_cast %147 : vector<128xf32> to vector<1x128xf32>
    %cst_70 = arith.constant 8.000000e+00 : f32
    %149 = vector.broadcast %cst_70 : f32 to vector<1x128xf32>
    %150 = arith.divf %148, %149 : vector<1x128xf32>
    %cst_71 = arith.constant 9.99999974E-6 : f32
    %151 = vector.broadcast %cst_71 : f32 to vector<1x128xf32>
    %152 = arith.addf %150, %151 : vector<1x128xf32>
    %153 = math.rsqrt %152 : vector<1x128xf32>
    %154 = arith.mulf %12, %153 : vector<1x128xf32>
    %155 = arith.mulf %143, %154 : vector<1x128xf32>
    %156 = arith.subf %13, %155 : vector<1x128xf32>
    %157 = vector.broadcast %154 : vector<1x128xf32> to vector<8x128xf32>
    %158 = arith.mulf %139, %157 : vector<8x128xf32>
    %159 = vector.broadcast %156 : vector<1x128xf32> to vector<8x128xf32>
    %160 = arith.addf %158, %159 : vector<8x128xf32>
    %161 = math.absf %160 : vector<8x128xf32>
    %cst_72 = arith.constant 0.707106769 : f32
    %162 = vector.broadcast %cst_72 : f32 to vector<8x128xf32>
    %163 = arith.mulf %162, %161 : vector<8x128xf32>
    %cst_73 = arith.constant 0.327591091 : f32
    %164 = vector.broadcast %cst_73 : f32 to vector<8x128xf32>
    %165 = arith.mulf %164, %163 : vector<8x128xf32>
    %cst_74 = arith.constant 1.000000e+00 : f32
    %166 = vector.broadcast %cst_74 : f32 to vector<8x128xf32>
    %167 = arith.addf %166, %165 : vector<8x128xf32>
    %cst_75 = arith.constant 1.000000e+00 : f32
    %168 = vector.broadcast %cst_75 : f32 to vector<8x128xf32>
    %169 = arith.divf %168, %167 : vector<8x128xf32>
    %cst_76 = arith.constant 1.06140542 : f32
    %170 = vector.broadcast %cst_76 : f32 to vector<8x128xf32>
    %171 = arith.mulf %170, %169 : vector<8x128xf32>
    %cst_77 = arith.constant -1.45315206 : f32
    %172 = vector.broadcast %cst_77 : f32 to vector<8x128xf32>
    %173 = arith.addf %171, %172 : vector<8x128xf32>
    %174 = arith.mulf %173, %169 : vector<8x128xf32>
    %cst_78 = arith.constant 1.42141378 : f32
    %175 = vector.broadcast %cst_78 : f32 to vector<8x128xf32>
    %176 = arith.addf %174, %175 : vector<8x128xf32>
    %177 = arith.mulf %176, %169 : vector<8x128xf32>
    %cst_79 = arith.constant -0.284496725 : f32
    %178 = vector.broadcast %cst_79 : f32 to vector<8x128xf32>
    %179 = arith.addf %177, %178 : vector<8x128xf32>
    %180 = arith.mulf %179, %169 : vector<8x128xf32>
    %cst_80 = arith.constant 0.254829586 : f32
    %181 = vector.broadcast %cst_80 : f32 to vector<8x128xf32>
    %182 = arith.addf %180, %181 : vector<8x128xf32>
    %183 = arith.mulf %182, %169 : vector<8x128xf32>
    %184 = arith.addf %160, %161 : vector<8x128xf32>
    %cst_81 = arith.constant 5.000000e-01 : f32
    %185 = vector.broadcast %cst_81 : f32 to vector<8x128xf32>
    %186 = arith.mulf %185, %184 : vector<8x128xf32>
    %cst_82 = arith.constant 5.000000e-01 : f32
    %187 = vector.broadcast %cst_82 : f32 to vector<8x128xf32>
    %188 = arith.mulf %187, %161 : vector<8x128xf32>
    %cst_83 = arith.constant 0.000000e+00 : f32
    %189 = vector.broadcast %cst_83 : f32 to vector<8x128xf32>
    %190 = arith.subf %189, %163 : vector<8x128xf32>
    %191 = arith.mulf %190, %163 : vector<8x128xf32>
    %192 = math.exp %191 : vector<8x128xf32>
    %193 = arith.mulf %183, %192 : vector<8x128xf32>
    %194 = arith.mulf %188, %193 : vector<8x128xf32>
    %195 = arith.subf %186, %194 : vector<8x128xf32>
    %196 = arith.truncf %195 : vector<8x128xf32> to vector<8x128xbf16>
    %cst_84 = arith.constant dense<0.000000e+00> : vector<8x256xf32>
    %197 = tpu.matmul %196, %14, %cst_84 {dimension_numbers = #tpu.dot_dimension_numbers<[1], [0], [0], [1], [0, 0, 1, 1], [], []>} : vector<8x128xbf16>, vector<128x256xbf16>, vector<8x256xf32> -> vector<8x256xf32>
    %198 = vector.broadcast %15 : vector<1x256xf32> to vector<8x256xf32>
    %199 = arith.addf %197, %198 : vector<8x256xf32>
    %200 = vector.extract_strided_slice %199 {offsets = [0, 0], sizes = [8, 128], strides = [1, 1]} : vector<8x256xf32> to vector<8x128xf32>
    %201 = vector.extract_strided_slice %199 {offsets = [0, 128], sizes = [8, 128], strides = [1, 1]} : vector<8x256xf32> to vector<8x128xf32>
    %cst_85 = arith.constant 1.500000e+01 : f32
    %202 = vector.broadcast %cst_85 : f32 to vector<8x128xf32>
    %203 = arith.minimumf %201, %202 : vector<8x128xf32>
    %cst_86 = arith.constant 5.000000e-01 : f32
    %204 = vector.broadcast %cst_86 : f32 to vector<8x128xf32>
    %205 = arith.mulf %204, %203 : vector<8x128xf32>
    %206 = math.exp %205 : vector<8x128xf32>
    %207 = arith.mulf %1, %206 : vector<8x128xf32>
    %208 = arith.addf %207, %200 : vector<8x128xf32>
    %c0_87 = arith.constant 0 : index
    %c0_88 = arith.constant 0 : index
    %209 = vector.load %arg16[%c0_87, %c0_88] : memref<8x128xf32, #tpu.memory_space<vmem>>, vector<8x128xf32>
    tpu.vector_store %arg16[%c0_87, %c0_88], %200 {strides = array<i32>} : memref<8x128xf32, #tpu.memory_space<vmem>>, vector<8x128xf32>,
    %c0_89 = arith.constant 0 : index
    %c0_90 = arith.constant 0 : index
    %210 = vector.load %arg17[%c0_89, %c0_90] : memref<8x128xf32, #tpu.memory_space<vmem>>, vector<8x128xf32>
    tpu.vector_store %arg17[%c0_89, %c0_90], %203 {strides = array<i32>} : memref<8x128xf32, #tpu.memory_space<vmem>>, vector<8x128xf32>,
    %c0_91 = arith.constant 0 : index
    %c0_92 = arith.constant 0 : index
    %211 = vector.load %arg18[%c0_91, %c0_92] : memref<8x128xf32, #tpu.memory_space<vmem>>, vector<8x128xf32>
    tpu.vector_store %arg18[%c0_91, %c0_92], %208 {strides = array<i32>} : memref<8x128xf32, #tpu.memory_space<vmem>>, vector<8x128xf32>,
    return
  }
}

module attributes {stable_mosaic.version = 11 : i64} {
  func.func @kernel(%arg0: i32, %arg1: memref<8x128xf32, #tpu.memory_space<vmem>>, %arg2: memref<1x128x128xbf16, #tpu.memory_space<vmem>>, %arg3: memref<1x1x128xf32, #tpu.memory_space<vmem>>, %arg4: memref<1x128x128xbf16, #tpu.memory_space<vmem>>, %arg5: memref<1x1x128xf32, #tpu.memory_space<vmem>>, %arg6: memref<1x1x128xf32, #tpu.memory_space<vmem>>, %arg7: memref<1x1x128xf32, #tpu.memory_space<vmem>>, %arg8: memref<1x128x128xbf16, #tpu.memory_space<vmem>>, %arg9: memref<1x1x128xf32, #tpu.memory_space<vmem>>, %arg10: memref<1x1x128xf32, #tpu.memory_space<vmem>>, %arg11: memref<1x1x128xf32, #tpu.memory_space<vmem>>, %arg12: memref<1x128x256xbf16, #tpu.memory_space<vmem>>, %arg13: memref<1x1x256xf32, #tpu.memory_space<vmem>>, %arg14: memref<1x8x256xf32, #tpu.memory_space<vmem>>) attributes {dimension_semantics = [#tpu.dimension_semantics<parallel>], iteration_bounds = array<i64: 2>, scalar_prefetch = 0 : i64, scratch_operands = 0 : i64, tpu.core_type = #tpu.core_type<tc>, window_params = [{pipeline_mode = #tpu.pipeline_mode<synchronous>, transform_indices = @transform_0, window_bounds = array<i64: 8, 128>}, {transform_indices = @transform_1, window_bounds = array<i64: 1, 128, 128>}, {transform_indices = @transform_2, window_bounds = array<i64: 1, 1, 128>}, {transform_indices = @transform_3, window_bounds = array<i64: 1, 128, 128>}, {transform_indices = @transform_4, window_bounds = array<i64: 1, 1, 128>}, {transform_indices = @transform_5, window_bounds = array<i64: 1, 1, 128>}, {transform_indices = @transform_6, window_bounds = array<i64: 1, 1, 128>}, {transform_indices = @transform_7, window_bounds = array<i64: 1, 128, 128>}, {transform_indices = @transform_8, window_bounds = array<i64: 1, 1, 128>}, {transform_indices = @transform_9, window_bounds = array<i64: 1, 1, 128>}, {transform_indices = @transform_10, window_bounds = array<i64: 1, 1, 128>}, {transform_indices = @transform_11, window_bounds = array<i64: 1, 128, 256>}, {transform_indices = @transform_12, window_bounds = array<i64: 1, 1, 256>}, {transform_indices = @transform_13, window_bounds = array<i64: 1, 8, 256>}]} {
    %c0 = arith.constant 0 : index
    %c0_0 = arith.constant 0 : index
    %0 = vector.load %arg1[%c0, %c0_0] : memref<8x128xf32, #tpu.memory_space<vmem>>, vector<8x128xf32>
    %c0_1 = arith.constant 0 : index
    %c0_2 = arith.constant 0 : index
    %c0_3 = arith.constant 0 : index
    %1 = vector.load %arg2[%c0_1, %c0_2, %c0_3] : memref<1x128x128xbf16, #tpu.memory_space<vmem>>, vector<1x128x128xbf16>
    %2 = vector.shape_cast %1 : vector<1x128x128xbf16> to vector<128x128xbf16>
    %c0_4 = arith.constant 0 : index
    %c0_5 = arith.constant 0 : index
    %c0_6 = arith.constant 0 : index
    %3 = vector.load %arg3[%c0_4, %c0_5, %c0_6] : memref<1x1x128xf32, #tpu.memory_space<vmem>>, vector<1x1x128xf32>
    %4 = vector.shape_cast %3 : vector<1x1x128xf32> to vector<1x128xf32>
    %c0_7 = arith.constant 0 : index
    %c0_8 = arith.constant 0 : index
    %c0_9 = arith.constant 0 : index
    %5 = vector.load %arg4[%c0_7, %c0_8, %c0_9] : memref<1x128x128xbf16, #tpu.memory_space<vmem>>, vector<1x128x128xbf16>
    %6 = vector.shape_cast %5 : vector<1x128x128xbf16> to vector<128x128xbf16>
    %c0_10 = arith.constant 0 : index
    %c0_11 = arith.constant 0 : index
    %c0_12 = arith.constant 0 : index
    %7 = vector.load %arg5[%c0_10, %c0_11, %c0_12] : memref<1x1x128xf32, #tpu.memory_space<vmem>>, vector<1x1x128xf32>
    %8 = vector.shape_cast %7 : vector<1x1x128xf32> to vector<1x128xf32>
    %c0_13 = arith.constant 0 : index
    %c0_14 = arith.constant 0 : index
    %c0_15 = arith.constant 0 : index
    %9 = vector.load %arg6[%c0_13, %c0_14, %c0_15] : memref<1x1x128xf32, #tpu.memory_space<vmem>>, vector<1x1x128xf32>
    %10 = vector.shape_cast %9 : vector<1x1x128xf32> to vector<1x128xf32>
    %c0_16 = arith.constant 0 : index
    %c0_17 = arith.constant 0 : index
    %c0_18 = arith.constant 0 : index
    %11 = vector.load %arg7[%c0_16, %c0_17, %c0_18] : memref<1x1x128xf32, #tpu.memory_space<vmem>>, vector<1x1x128xf32>
    %12 = vector.shape_cast %11 : vector<1x1x128xf32> to vector<1x128xf32>
    %c0_19 = arith.constant 0 : index
    %c0_20 = arith.constant 0 : index
    %c0_21 = arith.constant 0 : index
    %13 = vector.load %arg8[%c0_19, %c0_20, %c0_21] : memref<1x128x128xbf16, #tpu.memory_space<vmem>>, vector<1x128x128xbf16>
    %14 = vector.shape_cast %13 : vector<1x128x128xbf16> to vector<128x128xbf16>
    %c0_22 = arith.constant 0 : index
    %c0_23 = arith.constant 0 : index
    %c0_24 = arith.constant 0 : index
    %15 = vector.load %arg9[%c0_22, %c0_23, %c0_24] : memref<1x1x128xf32, #tpu.memory_space<vmem>>, vector<1x1x128xf32>
    %16 = vector.shape_cast %15 : vector<1x1x128xf32> to vector<1x128xf32>
    %c0_25 = arith.constant 0 : index
    %c0_26 = arith.constant 0 : index
    %c0_27 = arith.constant 0 : index
    %17 = vector.load %arg10[%c0_25, %c0_26, %c0_27] : memref<1x1x128xf32, #tpu.memory_space<vmem>>, vector<1x1x128xf32>
    %18 = vector.shape_cast %17 : vector<1x1x128xf32> to vector<1x128xf32>
    %c0_28 = arith.constant 0 : index
    %c0_29 = arith.constant 0 : index
    %c0_30 = arith.constant 0 : index
    %19 = vector.load %arg11[%c0_28, %c0_29, %c0_30] : memref<1x1x128xf32, #tpu.memory_space<vmem>>, vector<1x1x128xf32>
    %20 = vector.shape_cast %19 : vector<1x1x128xf32> to vector<1x128xf32>
    %c0_31 = arith.constant 0 : index
    %c0_32 = arith.constant 0 : index
    %c0_33 = arith.constant 0 : index
    %21 = vector.load %arg12[%c0_31, %c0_32, %c0_33] : memref<1x128x256xbf16, #tpu.memory_space<vmem>>, vector<1x128x256xbf16>
    %22 = vector.shape_cast %21 : vector<1x128x256xbf16> to vector<128x256xbf16>
    %c0_34 = arith.constant 0 : index
    %c0_35 = arith.constant 0 : index
    %c0_36 = arith.constant 0 : index
    %23 = vector.load %arg13[%c0_34, %c0_35, %c0_36] : memref<1x1x256xf32, #tpu.memory_space<vmem>>, vector<1x1x256xf32>
    %24 = vector.shape_cast %23 : vector<1x1x256xf32> to vector<1x256xf32>
    %25 = arith.truncf %0 : vector<8x128xf32> to vector<8x128xbf16>
    %cst = arith.constant dense<0.000000e+00> : vector<8x128xf32>
    %26 = tpu.matmul %25, %2, %cst {dimension_numbers = #tpu.dot_dimension_numbers<[1], [0], [0], [1], [0, 0, 1, 1], [], []>} : vector<8x128xbf16>, vector<128x128xbf16>, vector<8x128xf32> -> vector<8x128xf32>
    %27 = vector.broadcast %4 : vector<1x128xf32> to vector<8x128xf32>
    %28 = arith.addf %26, %27 : vector<8x128xf32>
    %29 = arith.truncf %28 : vector<8x128xf32> to vector<8x128xbf16>
    %cst_37 = arith.constant dense<0.000000e+00> : vector<8x128xf32>
    %30 = tpu.matmul %29, %6, %cst_37 {dimension_numbers = #tpu.dot_dimension_numbers<[1], [0], [0], [1], [0, 0, 1, 1], [], []>} : vector<8x128xbf16>, vector<128x128xbf16>, vector<8x128xf32> -> vector<8x128xf32>
    %31 = vector.broadcast %8 : vector<1x128xf32> to vector<8x128xf32>
    %32 = arith.addf %30, %31 : vector<8x128xf32>
    %cst_38 = arith.constant dense<0.000000e+00> : vector<128xf32>
    %33 = vector.multi_reduction <add>, %32, %cst_38 [0] : vector<8x128xf32> to vector<128xf32>
    %34 = vector.shape_cast %33 : vector<128xf32> to vector<1x128xf32>
    %cst_39 = arith.constant 8.000000e+00 : f32
    %35 = vector.broadcast %cst_39 : f32 to vector<1x128xf32>
    %36 = arith.divf %34, %35 : vector<1x128xf32>
    %37 = vector.broadcast %36 : vector<1x128xf32> to vector<8x128xf32>
    %38 = arith.subf %32, %37 : vector<8x128xf32>
    %39 = arith.mulf %38, %38 : vector<8x128xf32>
    %cst_40 = arith.constant dense<0.000000e+00> : vector<128xf32>
    %40 = vector.multi_reduction <add>, %39, %cst_40 [0] : vector<8x128xf32> to vector<128xf32>
    %41 = vector.shape_cast %40 : vector<128xf32> to vector<1x128xf32>
    %cst_41 = arith.constant 8.000000e+00 : f32
    %42 = vector.broadcast %cst_41 : f32 to vector<1x128xf32>
    %43 = arith.divf %41, %42 : vector<1x128xf32>
    %cst_42 = arith.constant 9.99999974E-6 : f32
    %44 = vector.broadcast %cst_42 : f32 to vector<1x128xf32>
    %45 = arith.addf %43, %44 : vector<1x128xf32>
    %46 = math.rsqrt %45 : vector<1x128xf32>
    %47 = arith.mulf %10, %46 : vector<1x128xf32>
    %48 = arith.mulf %36, %47 : vector<1x128xf32>
    %49 = arith.subf %12, %48 : vector<1x128xf32>
    %50 = vector.broadcast %47 : vector<1x128xf32> to vector<8x128xf32>
    %51 = arith.mulf %32, %50 : vector<8x128xf32>
    %52 = vector.broadcast %49 : vector<1x128xf32> to vector<8x128xf32>
    %53 = arith.addf %51, %52 : vector<8x128xf32>
    %54 = math.absf %53 : vector<8x128xf32>
    %cst_43 = arith.constant 0.707106769 : f32
    %55 = vector.broadcast %cst_43 : f32 to vector<8x128xf32>
    %56 = arith.mulf %55, %54 : vector<8x128xf32>
    %cst_44 = arith.constant 0.327591091 : f32
    %57 = vector.broadcast %cst_44 : f32 to vector<8x128xf32>
    %58 = arith.mulf %57, %56 : vector<8x128xf32>
    %cst_45 = arith.constant 1.000000e+00 : f32
    %59 = vector.broadcast %cst_45 : f32 to vector<8x128xf32>
    %60 = arith.addf %59, %58 : vector<8x128xf32>
    %cst_46 = arith.constant 1.000000e+00 : f32
    %61 = vector.broadcast %cst_46 : f32 to vector<8x128xf32>
    %62 = arith.divf %61, %60 : vector<8x128xf32>
    %cst_47 = arith.constant 1.06140542 : f32
    %63 = vector.broadcast %cst_47 : f32 to vector<8x128xf32>
    %64 = arith.mulf %63, %62 : vector<8x128xf32>
    %cst_48 = arith.constant -1.45315206 : f32
    %65 = vector.broadcast %cst_48 : f32 to vector<8x128xf32>
    %66 = arith.addf %64, %65 : vector<8x128xf32>
    %67 = arith.mulf %66, %62 : vector<8x128xf32>
    %cst_49 = arith.constant 1.42141378 : f32
    %68 = vector.broadcast %cst_49 : f32 to vector<8x128xf32>
    %69 = arith.addf %67, %68 : vector<8x128xf32>
    %70 = arith.mulf %69, %62 : vector<8x128xf32>
    %cst_50 = arith.constant -0.284496725 : f32
    %71 = vector.broadcast %cst_50 : f32 to vector<8x128xf32>
    %72 = arith.addf %70, %71 : vector<8x128xf32>
    %73 = arith.mulf %72, %62 : vector<8x128xf32>
    %cst_51 = arith.constant 0.254829586 : f32
    %74 = vector.broadcast %cst_51 : f32 to vector<8x128xf32>
    %75 = arith.addf %73, %74 : vector<8x128xf32>
    %76 = arith.mulf %75, %62 : vector<8x128xf32>
    %77 = arith.addf %53, %54 : vector<8x128xf32>
    %cst_52 = arith.constant 5.000000e-01 : f32
    %78 = vector.broadcast %cst_52 : f32 to vector<8x128xf32>
    %79 = arith.mulf %78, %77 : vector<8x128xf32>
    %cst_53 = arith.constant 5.000000e-01 : f32
    %80 = vector.broadcast %cst_53 : f32 to vector<8x128xf32>
    %81 = arith.mulf %80, %54 : vector<8x128xf32>
    %cst_54 = arith.constant 0.000000e+00 : f32
    %82 = vector.broadcast %cst_54 : f32 to vector<8x128xf32>
    %83 = arith.subf %82, %56 : vector<8x128xf32>
    %84 = arith.mulf %83, %56 : vector<8x128xf32>
    %85 = math.exp %84 : vector<8x128xf32>
    %86 = arith.mulf %76, %85 : vector<8x128xf32>
    %87 = arith.mulf %81, %86 : vector<8x128xf32>
    %88 = arith.subf %79, %87 : vector<8x128xf32>
    %89 = arith.truncf %88 : vector<8x128xf32> to vector<8x128xbf16>
    %cst_55 = arith.constant dense<0.000000e+00> : vector<8x128xf32>
    %90 = tpu.matmul %89, %14, %cst_55 {dimension_numbers = #tpu.dot_dimension_numbers<[1], [0], [0], [1], [0, 0, 1, 1], [], []>} : vector<8x128xbf16>, vector<128x128xbf16>, vector<8x128xf32> -> vector<8x128xf32>
    %91 = vector.broadcast %16 : vector<1x128xf32> to vector<8x128xf32>
    %92 = arith.addf %90, %91 : vector<8x128xf32>
    %cst_56 = arith.constant dense<0.000000e+00> : vector<128xf32>
    %93 = vector.multi_reduction <add>, %92, %cst_56 [0] : vector<8x128xf32> to vector<128xf32>
    %94 = vector.shape_cast %93 : vector<128xf32> to vector<1x128xf32>
    %cst_57 = arith.constant 8.000000e+00 : f32
    %95 = vector.broadcast %cst_57 : f32 to vector<1x128xf32>
    %96 = arith.divf %94, %95 : vector<1x128xf32>
    %97 = vector.broadcast %96 : vector<1x128xf32> to vector<8x128xf32>
    %98 = arith.subf %92, %97 : vector<8x128xf32>
    %99 = arith.mulf %98, %98 : vector<8x128xf32>
    %cst_58 = arith.constant dense<0.000000e+00> : vector<128xf32>
    %100 = vector.multi_reduction <add>, %99, %cst_58 [0] : vector<8x128xf32> to vector<128xf32>
    %101 = vector.shape_cast %100 : vector<128xf32> to vector<1x128xf32>
    %cst_59 = arith.constant 8.000000e+00 : f32
    %102 = vector.broadcast %cst_59 : f32 to vector<1x128xf32>
    %103 = arith.divf %101, %102 : vector<1x128xf32>
    %cst_60 = arith.constant 9.99999974E-6 : f32
    %104 = vector.broadcast %cst_60 : f32 to vector<1x128xf32>
    %105 = arith.addf %103, %104 : vector<1x128xf32>
    %106 = math.rsqrt %105 : vector<1x128xf32>
    %107 = arith.mulf %18, %106 : vector<1x128xf32>
    %108 = arith.mulf %96, %107 : vector<1x128xf32>
    %109 = arith.subf %20, %108 : vector<1x128xf32>
    %110 = vector.broadcast %107 : vector<1x128xf32> to vector<8x128xf32>
    %111 = arith.mulf %92, %110 : vector<8x128xf32>
    %112 = vector.broadcast %109 : vector<1x128xf32> to vector<8x128xf32>
    %113 = arith.addf %111, %112 : vector<8x128xf32>
    %114 = math.absf %113 : vector<8x128xf32>
    %cst_61 = arith.constant 0.707106769 : f32
    %115 = vector.broadcast %cst_61 : f32 to vector<8x128xf32>
    %116 = arith.mulf %115, %114 : vector<8x128xf32>
    %cst_62 = arith.constant 0.327591091 : f32
    %117 = vector.broadcast %cst_62 : f32 to vector<8x128xf32>
    %118 = arith.mulf %117, %116 : vector<8x128xf32>
    %cst_63 = arith.constant 1.000000e+00 : f32
    %119 = vector.broadcast %cst_63 : f32 to vector<8x128xf32>
    %120 = arith.addf %119, %118 : vector<8x128xf32>
    %cst_64 = arith.constant 1.000000e+00 : f32
    %121 = vector.broadcast %cst_64 : f32 to vector<8x128xf32>
    %122 = arith.divf %121, %120 : vector<8x128xf32>
    %cst_65 = arith.constant 1.06140542 : f32
    %123 = vector.broadcast %cst_65 : f32 to vector<8x128xf32>
    %124 = arith.mulf %123, %122 : vector<8x128xf32>
    %cst_66 = arith.constant -1.45315206 : f32
    %125 = vector.broadcast %cst_66 : f32 to vector<8x128xf32>
    %126 = arith.addf %124, %125 : vector<8x128xf32>
    %127 = arith.mulf %126, %122 : vector<8x128xf32>
    %cst_67 = arith.constant 1.42141378 : f32
    %128 = vector.broadcast %cst_67 : f32 to vector<8x128xf32>
    %129 = arith.addf %127, %128 : vector<8x128xf32>
    %130 = arith.mulf %129, %122 : vector<8x128xf32>
    %cst_68 = arith.constant -0.284496725 : f32
    %131 = vector.broadcast %cst_68 : f32 to vector<8x128xf32>
    %132 = arith.addf %130, %131 : vector<8x128xf32>
    %133 = arith.mulf %132, %122 : vector<8x128xf32>
    %cst_69 = arith.constant 0.254829586 : f32
    %134 = vector.broadcast %cst_69 : f32 to vector<8x128xf32>
    %135 = arith.addf %133, %134 : vector<8x128xf32>
    %136 = arith.mulf %135, %122 : vector<8x128xf32>
    %137 = arith.addf %113, %114 : vector<8x128xf32>
    %cst_70 = arith.constant 5.000000e-01 : f32
    %138 = vector.broadcast %cst_70 : f32 to vector<8x128xf32>
    %139 = arith.mulf %138, %137 : vector<8x128xf32>
    %cst_71 = arith.constant 5.000000e-01 : f32
    %140 = vector.broadcast %cst_71 : f32 to vector<8x128xf32>
    %141 = arith.mulf %140, %114 : vector<8x128xf32>
    %cst_72 = arith.constant 0.000000e+00 : f32
    %142 = vector.broadcast %cst_72 : f32 to vector<8x128xf32>
    %143 = arith.subf %142, %116 : vector<8x128xf32>
    %144 = arith.mulf %143, %116 : vector<8x128xf32>
    %145 = math.exp %144 : vector<8x128xf32>
    %146 = arith.mulf %136, %145 : vector<8x128xf32>
    %147 = arith.mulf %141, %146 : vector<8x128xf32>
    %148 = arith.subf %139, %147 : vector<8x128xf32>
    %149 = arith.truncf %148 : vector<8x128xf32> to vector<8x128xbf16>
    %cst_73 = arith.constant dense<0.000000e+00> : vector<8x256xf32>
    %150 = tpu.matmul %149, %22, %cst_73 {dimension_numbers = #tpu.dot_dimension_numbers<[1], [0], [0], [1], [0, 0, 1, 1], [], []>} : vector<8x128xbf16>, vector<128x256xbf16>, vector<8x256xf32> -> vector<8x256xf32>
    %151 = vector.broadcast %24 : vector<1x256xf32> to vector<8x256xf32>
    %152 = arith.addf %150, %151 : vector<8x256xf32>
    %c0_i32 = arith.constant 0 : i32
    %153 = arith.cmpi eq, %arg0, %c0_i32 : i32
    %154 = arith.extui %153 : i1 to i32
    %c0_i32_74 = arith.constant 0 : i32
    %155 = arith.cmpi ne, %154, %c0_i32_74 : i32
    scf.if %155 {
      %c0_76 = arith.constant 0 : index
      %c0_77 = arith.constant 0 : index
      %c0_78 = arith.constant 0 : index
      %159 = vector.load %arg14[%c0_76, %c0_77, %c0_78] : memref<1x8x256xf32, #tpu.memory_space<vmem>>, vector<1x8x256xf32>
      %160 = vector.shape_cast %159 : vector<1x8x256xf32> to vector<8x256xf32>
      %161 = vector.shape_cast %152 : vector<8x256xf32> to vector<1x8x256xf32>
      tpu.vector_store %arg14[%c0_76, %c0_77, %c0_78], %161 {strides = array<i32>} : memref<1x8x256xf32, #tpu.memory_space<vmem>>, vector<1x8x256xf32>,
    } else {
    }
    %c1_i32 = arith.constant 1 : i32
    %156 = arith.cmpi eq, %arg0, %c1_i32 : i32
    %157 = arith.extui %156 : i1 to i32
    %c0_i32_75 = arith.constant 0 : i32
    %158 = arith.cmpi ne, %157, %c0_i32_75 : i32
    scf.if %158 {
      %159 = arith.negf %152 : vector<8x256xf32>
      %160 = math.exp %159 : vector<8x256xf32>
      %cst_76 = arith.constant 1.000000e+00 : f32
      %161 = vector.broadcast %cst_76 : f32 to vector<8x256xf32>
      %162 = arith.addf %161, %160 : vector<8x256xf32>
      %163 = arith.divf %161, %162 : vector<8x256xf32>
      %c0_77 = arith.constant 0 : index
      %c0_78 = arith.constant 0 : index
      %c0_79 = arith.constant 0 : index
      %164 = vector.load %arg14[%c0_77, %c0_78, %c0_79] : memref<1x8x256xf32, #tpu.memory_space<vmem>>, vector<1x8x256xf32>
      %165 = vector.shape_cast %164 : vector<1x8x256xf32> to vector<8x256xf32>
      %166 = vector.shape_cast %163 : vector<8x256xf32> to vector<1x8x256xf32>
      tpu.vector_store %arg14[%c0_77, %c0_78, %c0_79], %166 {strides = array<i32>} : memref<1x8x256xf32, #tpu.memory_space<vmem>>, vector<1x8x256xf32>,
    } else {
    }
    return
  }
  func.func @transform_0(%arg0: i32) -> (i32, i32) {
    %c0_i32 = arith.constant 0 : i32
    %c0_i32_0 = arith.constant 0 : i32
    %c0_i32_1 = arith.constant 0 : i32
    return %c0_i32, %c0_i32_0 : i32, i32
  }
  func.func @transform_1(%arg0: i32) -> (i32, i32, i32) {
    %c0_i32 = arith.constant 0 : i32
    %c0_i32_0 = arith.constant 0 : i32
    %c0_i32_1 = arith.constant 0 : i32
    return %arg0, %c0_i32, %c0_i32_0 : i32, i32, i32
  }
  func.func @transform_2(%arg0: i32) -> (i32, i32, i32) {
    %c0_i32 = arith.constant 0 : i32
    %c0_i32_0 = arith.constant 0 : i32
    %c0_i32_1 = arith.constant 0 : i32
    return %arg0, %c0_i32, %c0_i32_0 : i32, i32, i32
  }
  func.func @transform_3(%arg0: i32) -> (i32, i32, i32) {
    %c0_i32 = arith.constant 0 : i32
    %c0_i32_0 = arith.constant 0 : i32
    %c0_i32_1 = arith.constant 0 : i32
    return %arg0, %c0_i32, %c0_i32_0 : i32, i32, i32
  }
  func.func @transform_4(%arg0: i32) -> (i32, i32, i32) {
    %c0_i32 = arith.constant 0 : i32
    %c0_i32_0 = arith.constant 0 : i32
    %c0_i32_1 = arith.constant 0 : i32
    return %arg0, %c0_i32, %c0_i32_0 : i32, i32, i32
  }
  func.func @transform_5(%arg0: i32) -> (i32, i32, i32) {
    %c0_i32 = arith.constant 0 : i32
    %c0_i32_0 = arith.constant 0 : i32
    %c0_i32_1 = arith.constant 0 : i32
    return %arg0, %c0_i32, %c0_i32_0 : i32, i32, i32
  }
  func.func @transform_6(%arg0: i32) -> (i32, i32, i32) {
    %c0_i32 = arith.constant 0 : i32
    %c0_i32_0 = arith.constant 0 : i32
    %c0_i32_1 = arith.constant 0 : i32
    return %arg0, %c0_i32, %c0_i32_0 : i32, i32, i32
  }
  func.func @transform_7(%arg0: i32) -> (i32, i32, i32) {
    %c0_i32 = arith.constant 0 : i32
    %c0_i32_0 = arith.constant 0 : i32
    %c0_i32_1 = arith.constant 0 : i32
    return %arg0, %c0_i32, %c0_i32_0 : i32, i32, i32
  }
  func.func @transform_8(%arg0: i32) -> (i32, i32, i32) {
    %c0_i32 = arith.constant 0 : i32
    %c0_i32_0 = arith.constant 0 : i32
    %c0_i32_1 = arith.constant 0 : i32
    return %arg0, %c0_i32, %c0_i32_0 : i32, i32, i32
  }
  func.func @transform_9(%arg0: i32) -> (i32, i32, i32) {
    %c0_i32 = arith.constant 0 : i32
    %c0_i32_0 = arith.constant 0 : i32
    %c0_i32_1 = arith.constant 0 : i32
    return %arg0, %c0_i32, %c0_i32_0 : i32, i32, i32
  }
  func.func @transform_10(%arg0: i32) -> (i32, i32, i32) {
    %c0_i32 = arith.constant 0 : i32
    %c0_i32_0 = arith.constant 0 : i32
    %c0_i32_1 = arith.constant 0 : i32
    return %arg0, %c0_i32, %c0_i32_0 : i32, i32, i32
  }
  func.func @transform_11(%arg0: i32) -> (i32, i32, i32) {
    %c0_i32 = arith.constant 0 : i32
    %c0_i32_0 = arith.constant 0 : i32
    %c0_i32_1 = arith.constant 0 : i32
    return %arg0, %c0_i32, %c0_i32_0 : i32, i32, i32
  }
  func.func @transform_12(%arg0: i32) -> (i32, i32, i32) {
    %c0_i32 = arith.constant 0 : i32
    %c0_i32_0 = arith.constant 0 : i32
    %c0_i32_1 = arith.constant 0 : i32
    return %arg0, %c0_i32, %c0_i32_0 : i32, i32, i32
  }
  func.func @transform_13(%arg0: i32) -> (i32, i32, i32) {
    %c0_i32 = arith.constant 0 : i32
    %c0_i32_0 = arith.constant 0 : i32
    %c0_i32_1 = arith.constant 0 : i32
    return %arg0, %c0_i32, %c0_i32_0 : i32, i32, i32
  }
}

</mosaic_0001>

<llo_original>
// kernel: forward.3
$region0: #{forward.3}
  #allocation0 [shape = 'u32[]', space=smem, size = 0x4, offset = 0x4, fixed_abs, tag = 'smem constant byte address 0x4 - core index']
  #allocation1 [shape = 'u32[144,128]{1,0:T(1,128)}', space=vmem, size = 0x12000, scoped, tag = 'internal scratch']
  %s0 = inlined_call_operand.vmem [shape: f32[8,128], index: 0, kind: input, shape index: {}]
  %s1 = inlined_call_operand.vmem [shape: bf16[2,128,128], index: 1, kind: input, shape index: {}]
  %s2 = inlined_call_operand.vmem [shape: f32[2,1,128], index: 2, kind: input, shape index: {}]
  %s3 = inlined_call_operand.hbm [shape: bf16[2,128,128], index: 3, kind: input, shape index: {}]
  %s4 = inlined_call_operand.vmem [shape: f32[2,1,128], index: 4, kind: input, shape index: {}]
  %s5 = inlined_call_operand.vmem [shape: f32[2,1,128], index: 5, kind: input, shape index: {}]
  %s6 = inlined_call_operand.vmem [shape: f32[2,1,128], index: 6, kind: input, shape index: {}]
  %s7 = inlined_call_operand.hbm [shape: bf16[2,128,128], index: 7, kind: input, shape index: {}]
  %s8 = inlined_call_operand.vmem [shape: f32[2,1,128], index: 8, kind: input, shape index: {}]
  %s9 = inlined_call_operand.vmem [shape: f32[2,1,128], index: 9, kind: input, shape index: {}]
  %s10 = inlined_call_operand.vmem [shape: f32[2,1,128], index: 10, kind: input, shape index: {}]
  %s11 = inlined_call_operand.vmem [shape: bf16[2,128,256], index: 11, kind: input, shape index: {}]
  %s12 = inlined_call_operand.vmem [shape: f32[2,1,256], index: 12, kind: input, shape index: {}]
  %s13 = inlined_call_operand.vmem [shape: f32[2,8,256], index: 13, kind: output, shape index: {}]
  %s14 = sld [smem:[#allocation0]]
  $region101: #{forward.3} parent=0
    _
  %s16 = ssub.s32 1, %s14
  %s17 = scalar_select 0, %s16, %s14
  $region1: #{forward.3} parent=0
    #allocation2 [shape = 'u8[65536]{0}', space=vmem, size = 0x10000, scoped, tag = 'input window, operand 3']
    #allocation3 [shape = 's32[2]{0}', space=sflag, size = 0x8, scoped, tag = 'scoped memory for forward.3']
    #allocation4 [shape = 'u8[65536]{0}', space=vmem, size = 0x10000, scoped, tag = 'input window, operand 7']
    #allocation5 [shape = 's32[2]{0}', space=sflag, size = 0x8, scoped, tag = 'scoped memory for forward.3']
    %18 = vsyncpa [#allocation3], 0
    %s19 = scalar_lea.sflag [#allocation3], 1
    %20 = vsyncpa %s19, 0
    %21 = vsyncpa [#allocation5], 0
    %s22 = scalar_lea.sflag [#allocation5], 1
    %23 = vsyncpa %s22, 0
    loop: start=0, step=1, limit=4
    $region2: #{forward.3} parent=1 // loop_pre_header
      _
    $region3: #{forward.3} parent=1 // loop_header
      %s25 = sphi 0, %s29
      %p26 = scmp.ge.s32.totalorder %s25, 4
      %s33 = sphi 0, %s33
      %s35 = sphi 0, %s33
      %s36 = sphi 0, %s35
      %s50 = sphi 0, %s36
      %s56 = sphi 0, %s58
      %s59 = sphi 0, %s56
      %s60 = sphi 0, %s59
      %s76 = sphi 0, %s60
      %s82 = sphi 0, %s84
      %s85 = sphi 0, %s82
      %s86 = sphi 0, %s85
      %s102 = sphi 0, %s86
      %s108 = sphi 0, %s110
      %s111 = sphi 0, %s108
      %s112 = sphi 0, %s111
      %s128 = sphi 0, %s112
      %s134 = sphi 0, %s136
      %s137 = sphi 0, %s134
      %s138 = sphi 0, %s137
      %s154 = sphi 0, %s138
      %s160 = sphi 0, %s162
      %s163 = sphi 0, %s160
      %s164 = sphi 0, %s163
      %s180 = sphi 0, %s164
      %s186 = sphi 0, %s188
      %s189 = sphi 0, %s186
      %s190 = sphi 0, %s189
      %s206 = sphi 0, %s190
      %s212 = sphi 0, %s214
      %s215 = sphi 0, %s212
      %s216 = sphi 0, %s215
      %s232 = sphi 0, %s216
      %s238 = sphi 0, %s240
      %s241 = sphi 0, %s238
      %s242 = sphi 0, %s241
      %s258 = sphi 0, %s242
      %s264 = sphi 0, %s266
      %s267 = sphi 0, %s264
      %s268 = sphi 0, %s267
      %s284 = sphi 0, %s268
      %s290 = sphi 0, %s292
      %s293 = sphi 0, %s290
      %s294 = sphi 0, %s293
      %s310 = sphi 0, %s294
      %s316 = sphi 0, %s318
      %s319 = sphi 0, %s316
      %s320 = sphi 0, %s319
      %s336 = sphi 0, %s320
      %s342 = sphi 0, %s344
      %s345 = sphi 0, %s342
      %s346 = sphi 0, %s345
      %s362 = sphi 0, %s346
      %s368 = sphi 0, %s370
      %s371 = sphi 0, %s368
      %s372 = sphi 0, %s371
      %s388 = sphi 0, %s372
    $region4: #{forward.3} parent=1 // loop_header_branch
      %28 = sbr.rel (%p26) target = $region8
    $region5: #{forward.3} parent=1 // loop_body
      %s30 = ssub.s32 %s25, 1
      %s31 = ssub.s32 %s25, 2
      %s32 = sadd.s32 %s25, 1
      %s34 = sadd.s32 %s33, 1
      %p37 = scmp.eq.s32.totalorder %s25, 1
      %p38 = scmp.ne.s32.totalorder %s33, %s35
      %p39 = scmp.eq.s32.totalorder %s25, 0
      %p40 = por %p38, %p39
      %p41 = scmp.ne.s32.totalorder %s33, %s35
      %p42 = scmp.eq.s32.totalorder %s30, 1
      %p43 = por %p41, %p42
      %p44 = scmp.ne.s32.totalorder %s35, %s36
      %p45 = scmp.eq.s32.totalorder %s30, 0
      %p46 = por %p44, %p45
      %p47 = scmp.ne.s32.totalorder %s35, %s36
      %p48 = scmp.eq.s32.totalorder %s31, 1
      %p49 = por %p47, %p48
      %p51 = scmp.ne.s32.totalorder %s36, %s50
      %p52 = scmp.eq.s32.totalorder %s31, 0
      %p53 = por %p51, %p52
      %s54 = ssub.s32 %s25, %s32
      %p55 = scmp.eq.s32.totalorder %s54, 0
      %s57 = sadd.s32 %s56, 1
      %s58 = scalar_select %p55, %s56, %s57
      %p61 = pneg %p55
      %p62 = scmp.eq.s32.totalorder %s25, 1
      %p63 = por %p61, %p62
      %p64 = scmp.ne.s32.totalorder %s56, %s59
      %p65 = scmp.eq.s32.totalorder %s25, 0
      %p66 = por %p64, %p65
      %p67 = scmp.ne.s32.totalorder %s56, %s59
      %p68 = scmp.eq.s32.totalorder %s30, 1
      %p69 = por %p67, %p68
      %p70 = scmp.ne.s32.totalorder %s59, %s60
      %p71 = scmp.eq.s32.totalorder %s30, 0
      %p72 = por %p70, %p71
      %p73 = scmp.ne.s32.totalorder %s59, %s60
      %p74 = scmp.eq.s32.totalorder %s31, 1
      %p75 = por %p73, %p74
      %p77 = scmp.ne.s32.totalorder %s60, %s76
      %p78 = scmp.eq.s32.totalorder %s31, 0
      %p79 = por %p77, %p78
      %s80 = ssub.s32 %s25, %s32
      %p81 = scmp.eq.s32.totalorder %s80, 0
      %s83 = sadd.s32 %s82, 1
      %s84 = scalar_select %p81, %s82, %s83
      %p87 = pneg %p81
      %p88 = scmp.eq.s32.totalorder %s25, 1
      %p89 = por %p87, %p88
      %p90 = scmp.ne.s32.totalorder %s82, %s85
      %p91 = scmp.eq.s32.totalorder %s25, 0
      %p92 = por %p90, %p91
      %p93 = scmp.ne.s32.totalorder %s82, %s85
      %p94 = scmp.eq.s32.totalorder %s30, 1
      %p95 = por %p93, %p94
      %p96 = scmp.ne.s32.totalorder %s85, %s86
      %p97 = scmp.eq.s32.totalorder %s30, 0
      %p98 = por %p96, %p97
      %p99 = scmp.ne.s32.totalorder %s85, %s86
      %p100 = scmp.eq.s32.totalorder %s31, 1
      %p101 = por %p99, %p100
      %p103 = scmp.ne.s32.totalorder %s86, %s102
      %p104 = scmp.eq.s32.totalorder %s31, 0
      %p105 = por %p103, %p104
      %s106 = ssub.s32 %s25, %s32
      %p107 = scmp.eq.s32.totalorder %s106, 0
      %s109 = sadd.s32 %s108, 1
      %s110 = scalar_select %p107, %s108, %s109
      %p113 = pneg %p107
      %p114 = scmp.eq.s32.totalorder %s25, 1
      %p115 = por %p113, %p114
      %p116 = scmp.ne.s32.totalorder %s108, %s111
      %p117 = scmp.eq.s32.totalorder %s25, 0
      %p118 = por %p116, %p117
      %p119 = scmp.ne.s32.totalorder %s108, %s111
      %p120 = scmp.eq.s32.totalorder %s30, 1
      %p121 = por %p119, %p120
      %p122 = scmp.ne.s32.totalorder %s111, %s112
      %p123 = scmp.eq.s32.totalorder %s30, 0
      %p124 = por %p122, %p123
      %p125 = scmp.ne.s32.totalorder %s111, %s112
      %p126 = scmp.eq.s32.totalorder %s31, 1
      %p127 = por %p125, %p126
      %p129 = scmp.ne.s32.totalorder %s112, %s128
      %p130 = scmp.eq.s32.totalorder %s31, 0
      %p131 = por %p129, %p130
      %s132 = ssub.s32 %s25, %s32
      %p133 = scmp.eq.s32.totalorder %s132, 0
      %s135 = sadd.s32 %s134, 1
      %s136 = scalar_select %p133, %s134, %s135
      %p139 = pneg %p133
      %p140 = scmp.eq.s32.totalorder %s25, 1
      %p141 = por %p139, %p140
      %p142 = scmp.ne.s32.totalorder %s134, %s137
      %p143 = scmp.eq.s32.totalorder %s25, 0
      %p144 = por %p142, %p143
      %p145 = scmp.ne.s32.totalorder %s134, %s137
      %p146 = scmp.eq.s32.totalorder %s30, 1
      %p147 = por %p145, %p146
      %p148 = scmp.ne.s32.totalorder %s137, %s138
      %p149 = scmp.eq.s32.totalorder %s30, 0
      %p150 = por %p148, %p149
      %p151 = scmp.ne.s32.totalorder %s137, %s138
      %p152 = scmp.eq.s32.totalorder %s31, 1
      %p153 = por %p151, %p152
      %p155 = scmp.ne.s32.totalorder %s138, %s154
      %p156 = scmp.eq.s32.totalorder %s31, 0
      %p157 = por %p155, %p156
      %s158 = ssub.s32 %s25, %s32
      %p159 = scmp.eq.s32.totalorder %s158, 0
      %s161 = sadd.s32 %s160, 1
      %s162 = scalar_select %p159, %s160, %s161
      %p165 = pneg %p159
      %p166 = scmp.eq.s32.totalorder %s25, 1
      %p167 = por %p165, %p166
      %p168 = scmp.ne.s32.totalorder %s160, %s163
      %p169 = scmp.eq.s32.totalorder %s25, 0
      %p170 = por %p168, %p169
      %p171 = scmp.ne.s32.totalorder %s160, %s163
      %p172 = scmp.eq.s32.totalorder %s30, 1
      %p173 = por %p171, %p172
      %p174 = scmp.ne.s32.totalorder %s163, %s164
      %p175 = scmp.eq.s32.totalorder %s30, 0
      %p176 = por %p174, %p175
      %p177 = scmp.ne.s32.totalorder %s163, %s164
      %p178 = scmp.eq.s32.totalorder %s31, 1
      %p179 = por %p177, %p178
      %p181 = scmp.ne.s32.totalorder %s164, %s180
      %p182 = scmp.eq.s32.totalorder %s31, 0
      %p183 = por %p181, %p182
      %s184 = ssub.s32 %s25, %s32
      %p185 = scmp.eq.s32.totalorder %s184, 0
      %s187 = sadd.s32 %s186, 1
      %s188 = scalar_select %p185, %s186, %s187
      %p191 = pneg %p185
      %p192 = scmp.eq.s32.totalorder %s25, 1
      %p193 = por %p191, %p192
      %p194 = scmp.ne.s32.totalorder %s186, %s189
      %p195 = scmp.eq.s32.totalorder %s25, 0
      %p196 = por %p194, %p195
      %p197 = scmp.ne.s32.totalorder %s186, %s189
      %p198 = scmp.eq.s32.totalorder %s30, 1
      %p199 = por %p197, %p198
      %p200 = scmp.ne.s32.totalorder %s189, %s190
      %p201 = scmp.eq.s32.totalorder %s30, 0
      %p202 = por %p200, %p201
      %p203 = scmp.ne.s32.totalorder %s189, %s190
      %p204 = scmp.eq.s32.totalorder %s31, 1
      %p205 = por %p203, %p204
      %p207 = scmp.ne.s32.totalorder %s190, %s206
      %p208 = scmp.eq.s32.totalorder %s31, 0
      %p209 = por %p207, %p208
      %s210 = ssub.s32 %s25, %s32
      %p211 = scmp.eq.s32.totalorder %s210, 0
      %s213 = sadd.s32 %s212, 1
      %s214 = scalar_select %p211, %s212, %s213
      %p217 = pneg %p211
      %p218 = scmp.eq.s32.totalorder %s25, 1
      %p219 = por %p217, %p218
      %p220 = scmp.ne.s32.totalorder %s212, %s215
      %p221 = scmp.eq.s32.totalorder %s25, 0
      %p222 = por %p220, %p221
      %p223 = scmp.ne.s32.totalorder %s212, %s215
      %p224 = scmp.eq.s32.totalorder %s30, 1
      %p225 = por %p223, %p224
      %p226 = scmp.ne.s32.totalorder %s215, %s216
      %p227 = scmp.eq.s32.totalorder %s30, 0
      %p228 = por %p226, %p227
      %p229 = scmp.ne.s32.totalorder %s215, %s216
      %p230 = scmp.eq.s32.totalorder %s31, 1
      %p231 = por %p229, %p230
      %p233 = scmp.ne.s32.totalorder %s216, %s232
      %p234 = scmp.eq.s32.totalorder %s31, 0
      %p235 = por %p233, %p234
      %s236 = ssub.s32 %s25, %s32
      %p237 = scmp.eq.s32.totalorder %s236, 0
      %s239 = sadd.s32 %s238, 1
      %s240 = scalar_select %p237, %s238, %s239
      %p243 = pneg %p237
      %p244 = scmp.eq.s32.totalorder %s25, 1
      %p245 = por %p243, %p244
      %p246 = scmp.ne.s32.totalorder %s238, %s241
      %p247 = scmp.eq.s32.totalorder %s25, 0
      %p248 = por %p246, %p247
      %p249 = scmp.ne.s32.totalorder %s238, %s241
      %p250 = scmp.eq.s32.totalorder %s30, 1
      %p251 = por %p249, %p250
      %p252 = scmp.ne.s32.totalorder %s241, %s242
      %p253 = scmp.eq.s32.totalorder %s30, 0
      %p254 = por %p252, %p253
      %p255 = scmp.ne.s32.totalorder %s241, %s242
      %p256 = scmp.eq.s32.totalorder %s31, 1
      %p257 = por %p255, %p256
      %p259 = scmp.ne.s32.totalorder %s242, %s258
      %p260 = scmp.eq.s32.totalorder %s31, 0
      %p261 = por %p259, %p260
      %s262 = ssub.s32 %s25, %s32
      %p263 = scmp.eq.s32.totalorder %s262, 0
      %s265 = sadd.s32 %s264, 1
      %s266 = scalar_select %p263, %s264, %s265
      %p269 = pneg %p263
      %p270 = scmp.eq.s32.totalorder %s25, 1
      %p271 = por %p269, %p270
      %p272 = scmp.ne.s32.totalorder %s264, %s267
      %p273 = scmp.eq.s32.totalorder %s25, 0
      %p274 = por %p272, %p273
      %p275 = scmp.ne.s32.totalorder %s264, %s267
      %p276 = scmp.eq.s32.totalorder %s30, 1
      %p277 = por %p275, %p276
      %p278 = scmp.ne.s32.totalorder %s267, %s268
      %p279 = scmp.eq.s32.totalorder %s30, 0
      %p280 = por %p278, %p279
      %p281 = scmp.ne.s32.totalorder %s267, %s268
      %p282 = scmp.eq.s32.totalorder %s31, 1
      %p283 = por %p281, %p282
      %p285 = scmp.ne.s32.totalorder %s268, %s284
      %p286 = scmp.eq.s32.totalorder %s31, 0
      %p287 = por %p285, %p286
      %s288 = ssub.s32 %s25, %s32
      %p289 = scmp.eq.s32.totalorder %s288, 0
      %s291 = sadd.s32 %s290, 1
      %s292 = scalar_select %p289, %s290, %s291
      %p295 = pneg %p289
      %p296 = scmp.eq.s32.totalorder %s25, 1
      %p297 = por %p295, %p296
      %p298 = scmp.ne.s32.totalorder %s290, %s293
      %p299 = scmp.eq.s32.totalorder %s25, 0
      %p300 = por %p298, %p299
      %p301 = scmp.ne.s32.totalorder %s290, %s293
      %p302 = scmp.eq.s32.totalorder %s30, 1
      %p303 = por %p301, %p302
      %p304 = scmp.ne.s32.totalorder %s293, %s294
      %p305 = scmp.eq.s32.totalorder %s30, 0
      %p306 = por %p304, %p305
      %p307 = scmp.ne.s32.totalorder %s293, %s294
      %p308 = scmp.eq.s32.totalorder %s31, 1
      %p309 = por %p307, %p308
      %p311 = scmp.ne.s32.totalorder %s294, %s310
      %p312 = scmp.eq.s32.totalorder %s31, 0
      %p313 = por %p311, %p312
      %s314 = ssub.s32 %s25, %s32
      %p315 = scmp.eq.s32.totalorder %s314, 0
      %s317 = sadd.s32 %s316, 1
      %s318 = scalar_select %p315, %s316, %s317
      %p321 = pneg %p315
      %p322 = scmp.eq.s32.totalorder %s25, 1
      %p323 = por %p321, %p322
      %p324 = scmp.ne.s32.totalorder %s316, %s319
      %p325 = scmp.eq.s32.totalorder %s25, 0
      %p326 = por %p324, %p325
      %p327 = scmp.ne.s32.totalorder %s316, %s319
      %p328 = scmp.eq.s32.totalorder %s30, 1
      %p329 = por %p327, %p328
      %p330 = scmp.ne.s32.totalorder %s319, %s320
      %p331 = scmp.eq.s32.totalorder %s30, 0
      %p332 = por %p330, %p331
      %p333 = scmp.ne.s32.totalorder %s319, %s320
      %p334 = scmp.eq.s32.totalorder %s31, 1
      %p335 = por %p333, %p334
      %p337 = scmp.ne.s32.totalorder %s320, %s336
      %p338 = scmp.eq.s32.totalorder %s31, 0
      %p339 = por %p337, %p338
      %s340 = ssub.s32 %s25, %s32
      %p341 = scmp.eq.s32.totalorder %s340, 0
      %s343 = sadd.s32 %s342, 1
      %s344 = scalar_select %p341, %s342, %s343
      %p347 = pneg %p341
      %p348 = scmp.eq.s32.totalorder %s25, 1
      %p349 = por %p347, %p348
      %p350 = scmp.ne.s32.totalorder %s342, %s345
      %p351 = scmp.eq.s32.totalorder %s25, 0
      %p352 = por %p350, %p351
      %p353 = scmp.ne.s32.totalorder %s342, %s345
      %p354 = scmp.eq.s32.totalorder %s30, 1
      %p355 = por %p353, %p354
      %p356 = scmp.ne.s32.totalorder %s345, %s346
      %p357 = scmp.eq.s32.totalorder %s30, 0
      %p358 = por %p356, %p357
      %p359 = scmp.ne.s32.totalorder %s345, %s346
      %p360 = scmp.eq.s32.totalorder %s31, 1
      %p361 = por %p359, %p360
      %p363 = scmp.ne.s32.totalorder %s346, %s362
      %p364 = scmp.eq.s32.totalorder %s31, 0
      %p365 = por %p363, %p364
      %s366 = ssub.s32 %s25, %s32
      %p367 = scmp.eq.s32.totalorder %s366, 0
      %s369 = sadd.s32 %s368, 1
      %s370 = scalar_select %p367, %s368, %s369
      %p373 = pneg %p367
      %p374 = scmp.eq.s32.totalorder %s25, 1
      %p375 = por %p373, %p374
      %p376 = scmp.ne.s32.totalorder %s368, %s371
      %p377 = scmp.eq.s32.totalorder %s25, 0
      %p378 = por %p376, %p377
      %p379 = scmp.ne.s32.totalorder %s368, %s371
      %p380 = scmp.eq.s32.totalorder %s30, 1
      %p381 = por %p379, %p380
      %p382 = scmp.ne.s32.totalorder %s371, %s372
      %p383 = scmp.eq.s32.totalorder %s30, 0
      %p384 = por %p382, %p383
      %p385 = scmp.ne.s32.totalorder %s371, %s372
      %p386 = scmp.eq.s32.totalorder %s31, 1
      %p387 = por %p385, %p386
      %p389 = scmp.ne.s32.totalorder %s372, %s388
      %p390 = scmp.eq.s32.totalorder %s31, 0
      %p391 = por %p389, %p390
      %p392 = scmp.le.s32.totalorder 1, %s25
      %p393 = scmp.lt.s32.totalorder %s25, 3
      %p394 = pnand %p392, %p393
      %p395 = pneg %p394
      // Predicated region
      $region9: #{forward.3} parent=5 // pred_check
        _
      $region10: #{forward.3} parent=5 // pred_check_branch
        %397 = sbr.rel (%p394) target = $region12
      $region11: #{forward.3} parent=5 // pred_region
        %s398 = ssub.s32 %s25, 1
        // Predicated region
        $region13: #{forward.3} parent=11 // pred_check
          %p399 = pneg %p46
        $region14: #{forward.3} parent=11 // pred_check_branch
          %401 = sbr.rel (%p399) target = $region16
        $region15: #{forward.3} parent=11 // pred_region
          _
        $region16: #{forward.3} parent=11 // pred_fallthru
          _
      $region12: #{forward.3} parent=5 // pred_fallthru
        _
      %p402 = scmp.lt.s32.totalorder %s25, 2
      // Predicated region
      $region17: #{forward.3} parent=5 // pred_check
        %p403 = pneg %p402
      $region18: #{forward.3} parent=5 // pred_check_branch
        %405 = sbr.rel (%p403) target = $region20
      $region19: #{forward.3} parent=5 // pred_region
        // Predicated region
        $region21: #{forward.3} parent=19 // pred_check
          %p406 = pneg %p66
        $region22: #{forward.3} parent=19 // pred_check_branch
          %408 = sbr.rel (%p406) target = $region24
        $region23: #{forward.3} parent=19 // pred_region
          %p409 = scmp.lt.s32.totalorder %s25, 1
          %s410 = scalar_select %p409, %s25, 1
          %s411 = smul.addr %s410, 16
          %s412 = smul.addr %s411, 4
          %s413 = scalar_lea.vmem %s1, %s412
        $region24: #{forward.3} parent=19 // pred_fallthru
          _
        // Predicated region
        $region25: #{forward.3} parent=19 // pred_check
          %p414 = pneg %p92
        $region26: #{forward.3} parent=19 // pred_check_branch
          %416 = sbr.rel (%p414) target = $region28
        $region27: #{forward.3} parent=19 // pred_region
          %p417 = scmp.lt.s32.totalorder %s25, 1
          %s418 = scalar_select %p417, %s25, 1
          %s419 = scalar_lea.vmem %s2, %s418
        $region28: #{forward.3} parent=19 // pred_fallthru
          _
        // Predicated region
        $region29: #{forward.3} parent=19 // pred_check
          %p420 = pneg %p118
        $region30: #{forward.3} parent=19 // pred_check_branch
          %422 = sbr.rel (%p420) target = $region32
        $region31: #{forward.3} parent=19 // pred_region
          %s423 = sand.u32 %s108, 1
          %s424 = scalar_lea.sflag [#allocation3], %s423
          %s425 = sand.u32 %s108, 1
          %s426 = smul.addr %s425, 64
          %s427 = scalar_lea.vmem [#allocation2], %s426
          %s429 = ssub.s32 1024, 1024
          %430 = vsyncadd %s424, %s429
          %s431 = smul.addr %s25, 16
          %s432 = smul.addr %s431, 64
          %s433 = scalar_lea.hbm %s3, %s432
          %s434 = sshll.u32 %s427, 4
          %s435 = int_to_ptr.vmem [resolvable:$true] %s434
          %440 = dma.hbm_to_vmem [thread:$0]  %s433, 1024, %s435, %s424, 64, 64, 4
        $region32: #{forward.3} parent=19 // pred_fallthru
          _
        // Predicated region
        $region33: #{forward.3} parent=19 // pred_check
          %p441 = pneg %p144
        $region34: #{forward.3} parent=19 // pred_check_branch
          %443 = sbr.rel (%p441) target = $region36
        $region35: #{forward.3} parent=19 // pred_region
          %p444 = scmp.lt.s32.totalorder %s25, 1
          %s445 = scalar_select %p444, %s25, 1
          %s446 = scalar_lea.vmem %s4, %s445
        $region36: #{forward.3} parent=19 // pred_fallthru
          _
        // Predicated region
        $region37: #{forward.3} parent=19 // pred_check
          %p447 = pneg %p170
        $region38: #{forward.3} parent=19 // pred_check_branch
          %449 = sbr.rel (%p447) target = $region40
        $region39: #{forward.3} parent=19 // pred_region
          %p450 = scmp.lt.s32.totalorder %s25, 1
          %s451 = scalar_select %p450, %s25, 1
          %s452 = scalar_lea.vmem %s5, %s451
        $region40: #{forward.3} parent=19 // pred_fallthru
          _
        // Predicated region
        $region41: #{forward.3} parent=19 // pred_check
          %p453 = pneg %p196
        $region42: #{forward.3} parent=19 // pred_check_branch
          %455 = sbr.rel (%p453) target = $region44
        $region43: #{forward.3} parent=19 // pred_region
          %p456 = scmp.lt.s32.totalorder %s25, 1
          %s457 = scalar_select %p456, %s25, 1
          %s458 = scalar_lea.vmem %s6, %s457
        $region44: #{forward.3} parent=19 // pred_fallthru
          _
        // Predicated region
        $region45: #{forward.3} parent=19 // pred_check
          %p459 = pneg %p222
        $region46: #{forward.3} parent=19 // pred_check_branch
          %461 = sbr.rel (%p459) target = $region48
        $region47: #{forward.3} parent=19 // pred_region
          %s462 = sand.u32 %s212, 1
          %s463 = scalar_lea.sflag [#allocation5], %s462
          %s464 = sand.u32 %s212, 1
          %s465 = smul.addr %s464, 64
          %s466 = scalar_lea.vmem [#allocation4], %s465
          %s468 = ssub.s32 1024, 1024
          %469 = vsyncadd %s463, %s468
          %s470 = smul.addr %s25, 16
          %s471 = smul.addr %s470, 64
          %s472 = scalar_lea.hbm %s7, %s471
          %s473 = sshll.u32 %s466, 4
          %s474 = int_to_ptr.vmem [resolvable:$true] %s473
          %479 = dma.hbm_to_vmem [thread:$0]  %s472, 1024, %s474, %s463, 64, 64, 4
        $region48: #{forward.3} parent=19 // pred_fallthru
          _
        // Predicated region
        $region49: #{forward.3} parent=19 // pred_check
          %p480 = pneg %p248
        $region50: #{forward.3} parent=19 // pred_check_branch
          %482 = sbr.rel (%p480) target = $region52
        $region51: #{forward.3} parent=19 // pred_region
          %p483 = scmp.lt.s32.totalorder %s25, 1
          %s484 = scalar_select %p483, %s25, 1
          %s485 = scalar_lea.vmem %s8, %s484
        $region52: #{forward.3} parent=19 // pred_fallthru
          _
        // Predicated region
        $region53: #{forward.3} parent=19 // pred_check
          %p486 = pneg %p274
        $region54: #{forward.3} parent=19 // pred_check_branch
          %488 = sbr.rel (%p486) target = $region56
        $region55: #{forward.3} parent=19 // pred_region
          %p489 = scmp.lt.s32.totalorder %s25, 1
          %s490 = scalar_select %p489, %s25, 1
          %s491 = scalar_lea.vmem %s9, %s490
        $region56: #{forward.3} parent=19 // pred_fallthru
          _
        // Predicated region
        $region57: #{forward.3} parent=19 // pred_check
          %p492 = pneg %p300
        $region58: #{forward.3} parent=19 // pred_check_branch
          %494 = sbr.rel (%p492) target = $region60
        $region59: #{forward.3} parent=19 // pred_region
          %p495 = scmp.lt.s32.totalorder %s25, 1
          %s496 = scalar_select %p495, %s25, 1
          %s497 = scalar_lea.vmem %s10, %s496
        $region60: #{forward.3} parent=19 // pred_fallthru
          _
        // Predicated region
        $region61: #{forward.3} parent=19 // pred_check
          %p498 = pneg %p326
        $region62: #{forward.3} parent=19 // pred_check_branch
          %500 = sbr.rel (%p498) target = $region64
        $region63: #{forward.3} parent=19 // pred_region
          %p501 = scmp.lt.s32.totalorder %s25, 1
          %s502 = scalar_select %p501, %s25, 1
          %s503 = smul.addr %s502, 32
          %s504 = smul.addr %s503, 4
          %s505 = scalar_lea.vmem %s11, %s504
        $region64: #{forward.3} parent=19 // pred_fallthru
          _
        // Predicated region
        $region65: #{forward.3} parent=19 // pred_check
          %p506 = pneg %p352
        $region66: #{forward.3} parent=19 // pred_check_branch
          %508 = sbr.rel (%p506) target = $region68
        $region67: #{forward.3} parent=19 // pred_region
          %p509 = scmp.lt.s32.totalorder %s25, 1
          %s510 = scalar_select %p509, %s25, 1
          %s511 = smul.addr %s510, 2
          %s512 = scalar_lea.vmem %s12, %s511
        $region68: #{forward.3} parent=19 // pred_fallthru
          _
      $region20: #{forward.3} parent=5 // pred_fallthru
        _
      %p513 = scmp.le.s32.totalorder 1, %s25
      %p514 = scmp.lt.s32.totalorder %s25, 3
      %p515 = pnand %p513, %p514
      %p516 = pneg %p515
      // Predicated region
      $region69: #{forward.3} parent=5 // pred_check
        _
      $region70: #{forward.3} parent=5 // pred_check_branch
        %518 = sbr.rel (%p515) target = $region72
      $region71: #{forward.3} parent=5 // pred_region
        %s519 = ssub.s32 %s25, 1
        %s520 = sand.u32 %s111, 1
        %s521 = scalar_lea.sflag [#allocation3], %s520
        %s522 = sand.u32 %s111, 1
        %s523 = smul.addr %s522, 64
        %s524 = scalar_lea.vmem [#allocation2], %s523
        // Predicated region
        $region73: #{forward.3} parent=71 // pred_check
          %p525 = pneg %p124
        $region74: #{forward.3} parent=71 // pred_check_branch
          %527 = sbr.rel (%p525) target = $region76
        $region75: #{forward.3} parent=71 // pred_region
          %528 = dma.done %s521, 1024
        $region76: #{forward.3} parent=71 // pred_fallthru
          _
        %s529 = sand.u32 %s215, 1
        %s530 = scalar_lea.sflag [#allocation5], %s529
        %s531 = sand.u32 %s215, 1
        %s532 = smul.addr %s531, 64
        %s533 = scalar_lea.vmem [#allocation4], %s532
        // Predicated region
        $region77: #{forward.3} parent=71 // pred_check
          %p534 = pneg %p228
        $region78: #{forward.3} parent=71 // pred_check_branch
          %536 = sbr.rel (%p534) target = $region80
        $region79: #{forward.3} parent=71 // pred_region
          %537 = dma.done %s530, 1024
        $region80: #{forward.3} parent=71 // pred_fallthru
          _
        %p538 = pneg %p46
        %p539 = pneg %p43
        %p540 = scmp.lt.s32.totalorder %s30, 1
        %s541 = scalar_select %p540, %s30, 1
        %s542 = smul.addr %s541, 16
        %s543 = smul.addr %s542, 4
        %s544 = scalar_lea.vmem %s1, %s543
        %p545 = pneg %p72
        %p546 = pneg %p69
        %p547 = scmp.lt.s32.totalorder %s30, 1
        %s548 = scalar_select %p547, %s30, 1
        %s549 = scalar_lea.vmem %s2, %s548
        %p550 = pneg %p98
        %p551 = pneg %p95
        %s552 = sand.u32 %s111, 1
        %s553 = scalar_lea.sflag [#allocation3], %s552
        %s554 = sand.u32 %s111, 1
        %s555 = smul.addr %s554, 64
        %s556 = scalar_lea.vmem [#allocation2], %s555
        %p557 = pneg %p124
        %p558 = pneg %p121
        %p559 = scmp.lt.s32.totalorder %s30, 1
        %s560 = scalar_select %p559, %s30, 1
        %s561 = scalar_lea.vmem %s4, %s560
        %p562 = pneg %p150
        %p563 = pneg %p147
        %p564 = scmp.lt.s32.totalorder %s30, 1
        %s565 = scalar_select %p564, %s30, 1
        %s566 = scalar_lea.vmem %s5, %s565
        %p567 = pneg %p176
        %p568 = pneg %p173
        %p569 = scmp.lt.s32.totalorder %s30, 1
        %s570 = scalar_select %p569, %s30, 1
        %s571 = scalar_lea.vmem %s6, %s570
        %p572 = pneg %p202
        %p573 = pneg %p199
        %s574 = sand.u32 %s215, 1
        %s575 = scalar_lea.sflag [#allocation5], %s574
        %s576 = sand.u32 %s215, 1
        %s577 = smul.addr %s576, 64
        %s578 = scalar_lea.vmem [#allocation4], %s577
        %p579 = pneg %p228
        %p580 = pneg %p225
        %p581 = scmp.lt.s32.totalorder %s30, 1
        %s582 = scalar_select %p581, %s30, 1
        %s583 = scalar_lea.vmem %s8, %s582
        %p584 = pneg %p254
        %p585 = pneg %p251
        %p586 = scmp.lt.s32.totalorder %s30, 1
        %s587 = scalar_select %p586, %s30, 1
        %s588 = scalar_lea.vmem %s9, %s587
        %p589 = pneg %p280
        %p590 = pneg %p277
        %p591 = scmp.lt.s32.totalorder %s30, 1
        %s592 = scalar_select %p591, %s30, 1
        %s593 = scalar_lea.vmem %s10, %s592
        %p594 = pneg %p306
        %p595 = pneg %p303
        %p596 = scmp.lt.s32.totalorder %s30, 1
        %s597 = scalar_select %p596, %s30, 1
        %s598 = smul.addr %s597, 32
        %s599 = smul.addr %s598, 4
        %s600 = scalar_lea.vmem %s11, %s599
        %p601 = pneg %p332
        %p602 = pneg %p329
        %p603 = scmp.lt.s32.totalorder %s30, 1
        %s604 = scalar_select %p603, %s30, 1
        %s605 = smul.addr %s604, 2
        %s606 = scalar_lea.vmem %s12, %s605
        %p607 = pneg %p358
        %p608 = pneg %p355
        %p609 = pneg %p384
        %p610 = pneg %p381
        %p611 = scmp.lt.s32.totalorder %s30, 1
        %s612 = scalar_select %p611, %s30, 1
        %s613 = smul.addr %s612, 2
        %s614 = smul.addr %s613, 8
        %s615 = scalar_lea.vmem %s13, %s614
        %p616 = scmp.lt.s32.totalorder %s30, 1
        %s617 = scalar_select %p616, %s30, 1
        %s618 = smul.addr %s617, 16
        %s619 = smul.addr %s618, 4
        %s620 = scalar_lea.vmem %s1, %s619
        %p621 = scmp.lt.s32.totalorder %s30, 1
        %s622 = scalar_select %p621, %s30, 1
        %s623 = scalar_lea.vmem %s2, %s622
        %p624 = scmp.lt.s32.totalorder %s30, 1
        %s625 = scalar_select %p624, %s30, 1
        %s626 = scalar_lea.vmem %s4, %s625
        %p627 = scmp.lt.s32.totalorder %s30, 1
        %s628 = scalar_select %p627, %s30, 1
        %s629 = scalar_lea.vmem %s5, %s628
        %p630 = scmp.lt.s32.totalorder %s30, 1
        %s631 = scalar_select %p630, %s30, 1
        %s632 = scalar_lea.vmem %s6, %s631
        %p633 = scmp.lt.s32.totalorder %s30, 1
        %s634 = scalar_select %p633, %s30, 1
        %s635 = scalar_lea.vmem %s8, %s634
        %p636 = scmp.lt.s32.totalorder %s30, 1
        %s637 = scalar_select %p636, %s30, 1
        %s638 = scalar_lea.vmem %s9, %s637
        %p639 = scmp.lt.s32.totalorder %s30, 1
        %s640 = scalar_select %p639, %s30, 1
        %s641 = scalar_lea.vmem %s10, %s640
        %p642 = scmp.lt.s32.totalorder %s30, 1
        %s643 = scalar_select %p642, %s30, 1
        %s644 = smul.addr %s643, 32
        %s645 = smul.addr %s644, 4
        %s646 = scalar_lea.vmem %s11, %s645
        %p647 = scmp.lt.s32.totalorder %s30, 1
        %s648 = scalar_select %p647, %s30, 1
        %s649 = smul.addr %s648, 2
        %s650 = scalar_lea.vmem %s12, %s649
        %p651 = scmp.lt.s32.totalorder %s30, 1
        %s652 = scalar_select %p651, %s30, 1
        %s653 = smul.addr %s652, 2
        %s654 = smul.addr %s653, 8
        %s655 = scalar_lea.vmem %s13, %s654
        %v657 = vld [vmem:[%s0] sm:$0xff]
        %v658 = vld [vmem:[%s620] sm:$0xf]
        %v659 = vld [vmem:[%s620 + $0x4] sm:$0xf]
        %v660 = vld [vmem:[%s620 + $0x8] sm:$0xf]
        %v661 = vld [vmem:[%s620 + $0xc] sm:$0xf]
        %v662 = vld [vmem:[%s620 + $0x10] sm:$0xf]
        %v663 = vld [vmem:[%s620 + $0x14] sm:$0xf]
        %v664 = vld [vmem:[%s620 + $0x18] sm:$0xf]
        %v665 = vld [vmem:[%s620 + $0x1c] sm:$0xf]
        %v666 = vld [vmem:[%s620 + $0x20] sm:$0xf]
        %v667 = vld [vmem:[%s620 + $0x24] sm:$0xf]
        %v668 = vld [vmem:[%s620 + $0x28] sm:$0xf]
        %v669 = vld [vmem:[%s620 + $0x2c] sm:$0xf]
        %v670 = vld [vmem:[%s620 + $0x30] sm:$0xf]
        %v671 = vld [vmem:[%s620 + $0x34] sm:$0xf]
        %v672 = vld [vmem:[%s620 + $0x38] sm:$0xf]
        %v673 = vld [vmem:[%s620 + $0x3c] sm:$0xf]
        %v674 = vld [vmem:[%s623] sm:$0x1]
        %v675 = vld [vmem:[%s524] sm:$0xf]
        %v676 = vld [vmem:[%s524 + $0x4] sm:$0xf]
        %v677 = vld [vmem:[%s524 + $0x8] sm:$0xf]
        %v678 = vld [vmem:[%s524 + $0xc] sm:$0xf]
        %v679 = vld [vmem:[%s524 + $0x10] sm:$0xf]
        %v680 = vld [vmem:[%s524 + $0x14] sm:$0xf]
        %v681 = vld [vmem:[%s524 + $0x18] sm:$0xf]
        %v682 = vld [vmem:[%s524 + $0x1c] sm:$0xf]
        %v683 = vld [vmem:[%s524 + $0x20] sm:$0xf]
        %v684 = vld [vmem:[%s524 + $0x24] sm:$0xf]
        %v685 = vld [vmem:[%s524 + $0x28] sm:$0xf]
        %v686 = vld [vmem:[%s524 + $0x2c] sm:$0xf]
        %v687 = vld [vmem:[%s524 + $0x30] sm:$0xf]
        %v688 = vld [vmem:[%s524 + $0x34] sm:$0xf]
        %v689 = vld [vmem:[%s524 + $0x38] sm:$0xf]
        %v690 = vld [vmem:[%s524 + $0x3c] sm:$0xf]
        %v691 = vld [vmem:[%s626] sm:$0x1]
        %v692 = vld [vmem:[%s629] sm:$0x1]
        %v693 = vld [vmem:[%s632] sm:$0x1]
        %v694 = vld [vmem:[%s533] sm:$0xf]
        %v695 = vld [vmem:[%s533 + $0x4] sm:$0xf]
        %v696 = vld [vmem:[%s533 + $0x8] sm:$0xf]
        %v697 = vld [vmem:[%s533 + $0xc] sm:$0xf]
        %v698 = vld [vmem:[%s533 + $0x10] sm:$0xf]
        %v699 = vld [vmem:[%s533 + $0x14] sm:$0xf]
        %v700 = vld [vmem:[%s533 + $0x18] sm:$0xf]
        %v701 = vld [vmem:[%s533 + $0x1c] sm:$0xf]
        %v702 = vld [vmem:[%s533 + $0x20] sm:$0xf]
        %v703 = vld [vmem:[%s533 + $0x24] sm:$0xf]
        %v704 = vld [vmem:[%s533 + $0x28] sm:$0xf]
        %v705 = vld [vmem:[%s533 + $0x2c] sm:$0xf]
        %v706 = vld [vmem:[%s533 + $0x30] sm:$0xf]
        %v707 = vld [vmem:[%s533 + $0x34] sm:$0xf]
        %v708 = vld [vmem:[%s533 + $0x38] sm:$0xf]
        %v709 = vld [vmem:[%s533 + $0x3c] sm:$0xf]
        %v710 = vld [vmem:[%s635] sm:$0x1]
        %v711 = vld [vmem:[%s638] sm:$0x1]
        %v712 = vld [vmem:[%s641] sm:$0x1]
        %v713 = vld [vmem:[%s646] sm:$0xff]
        %v714 = vld [vmem:[%s646 + $0x8] sm:$0xff]
        %v715 = vld [vmem:[%s646 + $0x10] sm:$0xff]
        %v716 = vld [vmem:[%s646 + $0x18] sm:$0xff]
        %v717 = vld [vmem:[%s646 + $0x20] sm:$0xff]
        %v718 = vld [vmem:[%s646 + $0x28] sm:$0xff]
        %v719 = vld [vmem:[%s646 + $0x30] sm:$0xff]
        %v720 = vld [vmem:[%s646 + $0x38] sm:$0xff]
        %v721 = vld [vmem:[%s646 + $0x40] sm:$0xff]
        %v722 = vld [vmem:[%s646 + $0x48] sm:$0xff]
        %v723 = vld [vmem:[%s646 + $0x50] sm:$0xff]
        %v724 = vld [vmem:[%s646 + $0x58] sm:$0xff]
        %v725 = vld [vmem:[%s646 + $0x60] sm:$0xff]
        %v726 = vld [vmem:[%s646 + $0x68] sm:$0xff]
        %v727 = vld [vmem:[%s646 + $0x70] sm:$0xff]
        %v728 = vld [vmem:[%s646 + $0x78] sm:$0xff]
        %v729 = vld [vmem:[%s650] sm:$0x3]
        %v730 = vpack.c.bf16 %v657, %v657
        %v732 = vlaneseq
        %v733 = vshrl.u32 %v732, 7
        %v734 = vsub.s32 0, %v733
        %v735 = vrot.slane %v674, %v734
        %v753 = vunpack.c.l.b16 %v658
        %v754 = vunpack.c.l.b16 %v659
        %v755 = vunpack.c.l.b16 %v660
        %v756 = vunpack.c.l.b16 %v661
        %v757 = vunpack.c.l.b16 %v662
        %v758 = vunpack.c.l.b16 %v663
        %v759 = vunpack.c.l.b16 %v664
        %v760 = vunpack.c.l.b16 %v665
        %v761 = vunpack.c.l.b16 %v666
        %v762 = vunpack.c.l.b16 %v667
        %v763 = vunpack.c.l.b16 %v668
        %v764 = vunpack.c.l.b16 %v669
        %v765 = vunpack.c.l.b16 %v670
        %v766 = vunpack.c.l.b16 %v671
        %v767 = vunpack.c.l.b16 %v672
        %v768 = vunpack.c.l.b16 %v673
        %v769 = vpack.c.b16 %v754, %v753
        %v770 = vpack.c.b16 %v756, %v755
        %v771 = vpack.c.b16 %v758, %v757
        %v772 = vpack.c.b16 %v760, %v759
        %v773 = vpack.c.b16 %v762, %v761
        %v774 = vpack.c.b16 %v764, %v763
        %v775 = vpack.c.b16 %v766, %v765
        %v776 = vpack.c.b16 %v768, %v767
        %785 = vmatprep.subr.bf16.mxu0 0
        %786 = vmatpush1.bf16.msra.mxu0 %v776
        %787 = vmatprep.subr.bf16.mxu0 0
        %788 = vmatpush1.bf16.msra.mxu0 %v775
        %789 = vmatprep.subr.bf16.mxu0 0
        %790 = vmatpush1.bf16.msra.mxu0 %v774
        %791 = vmatprep.subr.bf16.mxu0 0
        %792 = vmatpush1.bf16.msra.mxu0 %v773
        %793 = vmatprep.subr.bf16.mxu0 0
        %794 = vmatpush1.bf16.msra.mxu0 %v772
        %795 = vmatprep.subr.bf16.mxu0 0
        %796 = vmatpush1.bf16.msra.mxu0 %v771
        %797 = vmatprep.subr.bf16.mxu0 0
        %798 = vmatpush1.bf16.msra.mxu0 %v770
        %799 = vmatprep.subr.bf16.mxu0 0
        %800 = vmatpush1.bf16.msra.mxu0 %v769
        %801 = vmatprep.subr.bf16.mxu0 0
        %802 = vmatpush2.bf16.msra.mxu0 0
        %803 = vmatprep.subr.bf16.mxu0 0
        %804 = vmatpush2.bf16.msra.mxu0 0
        %805 = vmatprep.subr.bf16.mxu0 0
        %806 = vmatpush2.bf16.msra.mxu0 0
        %807 = vmatprep.subr.bf16.mxu0 0
        %808 = vmatpush2.bf16.msra.mxu0 0
        %809 = vmatprep.subr.bf16.mxu0 0
        %810 = vmatpush2.bf16.msra.mxu0 0
        %811 = vmatprep.subr.bf16.mxu0 0
        %812 = vmatpush2.bf16.msra.mxu0 0
        %813 = vmatprep.subr.bf16.mxu0 0
        %814 = vmatpush2.bf16.msra.mxu0 0
        %815 = vmatprep.subr.bf16.mxu0 0
        %816 = vmatpush2.bf16.msra.mxu0 0
        %817 = vmatprep.mubr.bf16.mxu0 0
        %818 = vmatmul.mubr.bf16.gmra.mxu0 %v730
        %v819 = vpop.f32.mrf.mxu0
        %v820 = vadd.f32 %v735, %v819
        %v821 = vpop.f32.mrf.mxu0
        %v822 = vpop.f32.mrf.mxu0
        %v823 = vpop.f32.mrf.mxu0
        %824 = vdwg.mxu0
        %v825 = vpack.c.bf16 %v820, %v820
        %v827 = vlaneseq
        %v828 = vshrl.u32 %v827, 7
        %v829 = vsub.s32 0, %v828
        %v830 = vrot.slane %v691, %v829
        %v848 = vunpack.c.l.b16 %v675
        %v849 = vunpack.c.l.b16 %v676
        %v850 = vunpack.c.l.b16 %v677
        %v851 = vunpack.c.l.b16 %v678
        %v852 = vunpack.c.l.b16 %v679
        %v853 = vunpack.c.l.b16 %v680
        %v854 = vunpack.c.l.b16 %v681
        %v855 = vunpack.c.l.b16 %v682
        %v856 = vunpack.c.l.b16 %v683
        %v857 = vunpack.c.l.b16 %v684
        %v858 = vunpack.c.l.b16 %v685
        %v859 = vunpack.c.l.b16 %v686
        %v860 = vunpack.c.l.b16 %v687
        %v861 = vunpack.c.l.b16 %v688
        %v862 = vunpack.c.l.b16 %v689
        %v863 = vunpack.c.l.b16 %v690
        %v864 = vpack.c.b16 %v849, %v848
        %v865 = vpack.c.b16 %v851, %v850
        %v866 = vpack.c.b16 %v853, %v852
        %v867 = vpack.c.b16 %v855, %v854
        %v868 = vpack.c.b16 %v857, %v856
        %v869 = vpack.c.b16 %v859, %v858
        %v870 = vpack.c.b16 %v861, %v860
        %v871 = vpack.c.b16 %v863, %v862
        %880 = vmatprep.subr.bf16.mxu0 0
        %881 = vmatpush1.bf16.msra.mxu0 %v871
        %882 = vmatprep.subr.bf16.mxu0 0
        %883 = vmatpush1.bf16.msra.mxu0 %v870
        %884 = vmatprep.subr.bf16.mxu0 0
        %885 = vmatpush1.bf16.msra.mxu0 %v869
        %886 = vmatprep.subr.bf16.mxu0 0
        %887 = vmatpush1.bf16.msra.mxu0 %v868
        %888 = vmatprep.subr.bf16.mxu0 0
        %889 = vmatpush1.bf16.msra.mxu0 %v867
        %890 = vmatprep.subr.bf16.mxu0 0
        %891 = vmatpush1.bf16.msra.mxu0 %v866
        %892 = vmatprep.subr.bf16.mxu0 0
        %893 = vmatpush1.bf16.msra.mxu0 %v865
        %894 = vmatprep.subr.bf16.mxu0 0
        %895 = vmatpush1.bf16.msra.mxu0 %v864
        %896 = vmatprep.subr.bf16.mxu0 0
        %897 = vmatpush2.bf16.msra.mxu0 0
        %898 = vmatprep.subr.bf16.mxu0 0
        %899 = vmatpush2.bf16.msra.mxu0 0
        %900 = vmatprep.subr.bf16.mxu0 0
        %901 = vmatpush2.bf16.msra.mxu0 0
        %902 = vmatprep.subr.bf16.mxu0 0
        %903 = vmatpush2.bf16.msra.mxu0 0
        %904 = vmatprep.subr.bf16.mxu0 0
        %905 = vmatpush2.bf16.msra.mxu0 0
        %906 = vmatprep.subr.bf16.mxu0 0
        %907 = vmatpush2.bf16.msra.mxu0 0
        %908 = vmatprep.subr.bf16.mxu0 0
        %909 = vmatpush2.bf16.msra.mxu0 0
        %910 = vmatprep.subr.bf16.mxu0 0
        %911 = vmatpush2.bf16.msra.mxu0 0
        %912 = vmatprep.mubr.bf16.mxu0 0
        %913 = vmatmul.mubr.bf16.gmra.mxu0 %v825
        %v914 = vpop.f32.mrf.mxu0
        %v915 = vadd.f32 %v830, %v914
        %v916 = vpop.f32.mrf.mxu0
        %v917 = vpop.f32.mrf.mxu0
        %v918 = vpop.f32.mrf.mxu0
        %919 = vdwg.mxu0
        %v920 = vrot.slane %v915, 4
        %v921 = vadd.f32 %v915, %v920
        %v922 = vrot.slane %v921, 2
        %v923 = vadd.f32 %v921, %v922
        %v924 = vrot.slane %v923, 1
        %v925 = vadd.f32 %v923, %v924
        %v926 = vrcp.pop 8.0
        %v927 = vmul.f32 %v925, %v926
        %v928 = vsub.f32 %v915, %v927
        %v929 = vmul.f32 %v928, %v928
        %v930 = vrot.slane %v929, 4
        %v931 = vadd.f32 %v929, %v930
        %v932 = vrot.slane %v931, 2
        %v933 = vadd.f32 %v931, %v932
        %v934 = vrot.slane %v933, 1
        %v935 = vadd.f32 %v933, %v934
        %v936 = vmul.f32 %v935, %v926
        %v937 = vadd.f32 %v936, 1e-05
        %v938 = vrsqrt.pop %v937
        %v939 = vmul.f32 %v692, %v938
        %v940 = vmul.f32 %v927, %v939
        %v941 = vsub.f32 %v693, %v940
        %v943 = vlaneseq
        %v944 = vshrl.u32 %v943, 7
        %v945 = vsub.s32 0, %v944
        %v946 = vrot.slane %v939, %v945
        %v948 = vmul.f32 %v915, %v946
        %v950 = vlaneseq
        %v951 = vshrl.u32 %v950, 7
        %v952 = vsub.s32 0, %v951
        %v953 = vrot.slane %v941, %v952
        %v955 = vadd.f32 %v948, %v953
        %v956 = vand.u32 2147483647, %v955
        %v957 = vmul.f32 %v956, 0.70710677
        %v958 = vmul.f32 %v957, 0.3275911
        %v959 = vadd.f32 %v958, 1.0
        %v960 = vrcp.pop %v959
        %v961 = vmul.f32 1.0, %v960
        %v962 = vmul.f32 %v961, 1.0614054
        %v963 = vadd.f32 %v962, -1.4531521
        %v964 = vmul.f32 %v963, %v961
        %v965 = vadd.f32 %v964, 1.4214138
        %v966 = vmul.f32 %v965, %v961
        %v967 = vadd.f32 %v966, -0.28449672
        %v968 = vmul.f32 %v967, %v961
        %v969 = vadd.f32 %v968, 0.2548296
        %v970 = vmul.f32 %v969, %v961
        %v971 = vadd.f32 %v955, %v956
        %v972 = vmul.f32 %v971, 0.5
        %v973 = vmul.f32 %v956, 0.5
        %v974 = vsub.f32 0.0, %v957
        %v975 = vmul.f32 %v974, %v957
        %v976 = vmul.f32 %v975, 1.442695
        %v977 = vpow.pop %v976
        %v978 = vmul.f32 %v970, %v977
        %v979 = vmul.f32 %v973, %v978
        %v980 = vsub.f32 %v972, %v979
        %v981 = vpack.c.bf16 %v980, %v980
        %v983 = vlaneseq
        %v984 = vshrl.u32 %v983, 7
        %v985 = vsub.s32 0, %v984
        %v986 = vrot.slane %v710, %v985
        %v1004 = vunpack.c.l.b16 %v694
        %v1005 = vunpack.c.l.b16 %v695
        %v1006 = vunpack.c.l.b16 %v696
        %v1007 = vunpack.c.l.b16 %v697
        %v1008 = vunpack.c.l.b16 %v698
        %v1009 = vunpack.c.l.b16 %v699
        %v1010 = vunpack.c.l.b16 %v700
        %v1011 = vunpack.c.l.b16 %v701
        %v1012 = vunpack.c.l.b16 %v702
        %v1013 = vunpack.c.l.b16 %v703
        %v1014 = vunpack.c.l.b16 %v704
        %v1015 = vunpack.c.l.b16 %v705
        %v1016 = vunpack.c.l.b16 %v706
        %v1017 = vunpack.c.l.b16 %v707
        %v1018 = vunpack.c.l.b16 %v708
        %v1019 = vunpack.c.l.b16 %v709
        %v1020 = vpack.c.b16 %v1005, %v1004
        %v1021 = vpack.c.b16 %v1007, %v1006
        %v1022 = vpack.c.b16 %v1009, %v1008
        %v1023 = vpack.c.b16 %v1011, %v1010
        %v1024 = vpack.c.b16 %v1013, %v1012
        %v1025 = vpack.c.b16 %v1015, %v1014
        %v1026 = vpack.c.b16 %v1017, %v1016
        %v1027 = vpack.c.b16 %v1019, %v1018
        %1036 = vmatprep.subr.bf16.mxu0 0
        %1037 = vmatpush1.bf16.msra.mxu0 %v1027
        %1038 = vmatprep.subr.bf16.mxu0 0
        %1039 = vmatpush1.bf16.msra.mxu0 %v1026
        %1040 = vmatprep.subr.bf16.mxu0 0
        %1041 = vmatpush1.bf16.msra.mxu0 %v1025
        %1042 = vmatprep.subr.bf16.mxu0 0
        %1043 = vmatpush1.bf16.msra.mxu0 %v1024
        %1044 = vmatprep.subr.bf16.mxu0 0
        %1045 = vmatpush1.bf16.msra.mxu0 %v1023
        %1046 = vmatprep.subr.bf16.mxu0 0
        %1047 = vmatpush1.bf16.msra.mxu0 %v1022
        %1048 = vmatprep.subr.bf16.mxu0 0
        %1049 = vmatpush1.bf16.msra.mxu0 %v1021
        %1050 = vmatprep.subr.bf16.mxu0 0
        %1051 = vmatpush1.bf16.msra.mxu0 %v1020
        %1052 = vmatprep.subr.bf16.mxu0 0
        %1053 = vmatpush2.bf16.msra.mxu0 0
        %1054 = vmatprep.subr.bf16.mxu0 0
        %1055 = vmatpush2.bf16.msra.mxu0 0
        %1056 = vmatprep.subr.bf16.mxu0 0
        %1057 = vmatpush2.bf16.msra.mxu0 0
        %1058 = vmatprep.subr.bf16.mxu0 0
        %1059 = vmatpush2.bf16.msra.mxu0 0
        %1060 = vmatprep.subr.bf16.mxu0 0
        %1061 = vmatpush2.bf16.msra.mxu0 0
        %1062 = vmatprep.subr.bf16.mxu0 0
        %1063 = vmatpush2.bf16.msra.mxu0 0
        %1064 = vmatprep.subr.bf16.mxu0 0
        %1065 = vmatpush2.bf16.msra.mxu0 0
        %1066 = vmatprep.subr.bf16.mxu0 0
        %1067 = vmatpush2.bf16.msra.mxu0 0
        %1068 = vmatprep.mubr.bf16.mxu0 0
        %1069 = vmatmul.mubr.bf16.gmra.mxu0 %v981
        %v1070 = vpop.f32.mrf.mxu0
        %v1071 = vadd.f32 %v986, %v1070
        %v1072 = vpop.f32.mrf.mxu0
        %v1073 = vpop.f32.mrf.mxu0
        %v1074 = vpop.f32.mrf.mxu0
        %1075 = vdwg.mxu0
        %v1076 = vrot.slane %v1071, 4
        %v1077 = vadd.f32 %v1071, %v1076
        %v1078 = vrot.slane %v1077, 2
        %v1079 = vadd.f32 %v1077, %v1078
        %v1080 = vrot.slane %v1079, 1
        %v1081 = vadd.f32 %v1079, %v1080
        %v1082 = vmul.f32 %v1081, %v926
        %v1083 = vsub.f32 %v1071, %v1082
        %v1084 = vmul.f32 %v1083, %v1083
        %v1085 = vrot.slane %v1084, 4
        %v1086 = vadd.f32 %v1084, %v1085
        %v1087 = vrot.slane %v1086, 2
        %v1088 = vadd.f32 %v1086, %v1087
        %v1089 = vrot.slane %v1088, 1
        %v1090 = vadd.f32 %v1088, %v1089
        %v1091 = vmul.f32 %v1090, %v926
        %v1092 = vadd.f32 %v1091, 1e-05
        %v1093 = vrsqrt.pop %v1092
        %v1094 = vmul.f32 %v711, %v1093
        %v1095 = vmul.f32 %v1082, %v1094
        %v1096 = vsub.f32 %v712, %v1095
        %v1098 = vlaneseq
        %v1099 = vshrl.u32 %v1098, 7
        %v1100 = vsub.s32 0, %v1099
        %v1101 = vrot.slane %v1094, %v1100
        %v1103 = vmul.f32 %v1071, %v1101
        %v1105 = vlaneseq
        %v1106 = vshrl.u32 %v1105, 7
        %v1107 = vsub.s32 0, %v1106
        %v1108 = vrot.slane %v1096, %v1107
        %v1110 = vadd.f32 %v1103, %v1108
        %v1111 = vand.u32 2147483647, %v1110
        %v1112 = vmul.f32 %v1111, 0.70710677
        %v1113 = vmul.f32 %v1112, 0.3275911
        %v1114 = vadd.f32 %v1113, 1.0
        %v1115 = vrcp.pop %v1114
        %v1116 = vmul.f32 1.0, %v1115
        %v1117 = vmul.f32 %v1116, 1.0614054
        %v1118 = vadd.f32 %v1117, -1.4531521
        %v1119 = vmul.f32 %v1118, %v1116
        %v1120 = vadd.f32 %v1119, 1.4214138
        %v1121 = vmul.f32 %v1120, %v1116
        %v1122 = vadd.f32 %v1121, -0.28449672
        %v1123 = vmul.f32 %v1122, %v1116
        %v1124 = vadd.f32 %v1123, 0.2548296
        %v1125 = vmul.f32 %v1124, %v1116
        %v1126 = vadd.f32 %v1110, %v1111
        %v1127 = vmul.f32 %v1126, 0.5
        %v1128 = vmul.f32 %v1111, 0.5
        %v1129 = vsub.f32 0.0, %v1112
        %v1130 = vmul.f32 %v1129, %v1112
        %v1131 = vmul.f32 %v1130, 1.442695
        %v1132 = vpow.pop %v1131
        %v1133 = vmul.f32 %v1125, %v1132
        %v1134 = vmul.f32 %v1128, %v1133
        %v1135 = vsub.f32 %v1127, %v1134
        %v1136 = vpack.c.bf16 %v1135, %v1135
        %v1138 = vlaneseq
        %v1139 = vshrl.u32 %v1138, 7
        %v1140 = vsub.s32 0, %v1139
        %v1141 = vrot.slane %v729, %v1140
        %v1142 = vlaneseq
        %v1143 = vshrl.u32 %v1142, 7
        %v1144 = vsub.s32 1, %v1143
        %v1145 = vrot.slane %v729, %v1144
        %v1164 = vunpack.c.l.b16 %v713
        %v1165 = vunpack.c.h.b16 %v713
        %v1166 = vunpack.c.l.b16 %v714
        %v1167 = vunpack.c.h.b16 %v714
        %v1168 = vunpack.c.l.b16 %v715
        %v1169 = vunpack.c.h.b16 %v715
        %v1170 = vunpack.c.l.b16 %v716
        %v1171 = vunpack.c.h.b16 %v716
        %v1172 = vunpack.c.l.b16 %v717
        %v1173 = vunpack.c.h.b16 %v717
        %v1174 = vunpack.c.l.b16 %v718
        %v1175 = vunpack.c.h.b16 %v718
        %v1176 = vunpack.c.l.b16 %v719
        %v1177 = vunpack.c.h.b16 %v719
        %v1178 = vunpack.c.l.b16 %v720
        %v1179 = vunpack.c.h.b16 %v720
        %v1180 = vunpack.c.l.b16 %v721
        %v1181 = vunpack.c.h.b16 %v721
        %v1182 = vunpack.c.l.b16 %v722
        %v1183 = vunpack.c.h.b16 %v722
        %v1184 = vunpack.c.l.b16 %v723
        %v1185 = vunpack.c.h.b16 %v723
        %v1186 = vunpack.c.l.b16 %v724
        %v1187 = vunpack.c.h.b16 %v724
        %v1188 = vunpack.c.l.b16 %v725
        %v1189 = vunpack.c.h.b16 %v725
        %v1190 = vunpack.c.l.b16 %v726
        %v1191 = vunpack.c.h.b16 %v726
        %v1192 = vunpack.c.l.b16 %v727
        %v1193 = vunpack.c.h.b16 %v727
        %v1194 = vunpack.c.l.b16 %v728
        %v1195 = vunpack.c.h.b16 %v728
        %v1196 = vpack.c.b16 %v1166, %v1164
        %v1197 = vpack.c.b16 %v1167, %v1165
        %v1198 = vpack.c.b16 %v1170, %v1168
        %v1199 = vpack.c.b16 %v1171, %v1169
        %v1200 = vpack.c.b16 %v1174, %v1172
        %v1201 = vpack.c.b16 %v1175, %v1173
        %v1202 = vpack.c.b16 %v1178, %v1176
        %v1203 = vpack.c.b16 %v1179, %v1177
        %v1204 = vpack.c.b16 %v1182, %v1180
        %v1205 = vpack.c.b16 %v1183, %v1181
        %v1206 = vpack.c.b16 %v1186, %v1184
        %v1207 = vpack.c.b16 %v1187, %v1185
        %v1208 = vpack.c.b16 %v1190, %v1188
        %v1209 = vpack.c.b16 %v1191, %v1189
        %v1210 = vpack.c.b16 %v1194, %v1192
        %v1211 = vpack.c.b16 %v1195, %v1193
        %1228 = vmatprep.subr.bf16.mxu0 %v1211
        %1229 = vmatpush1.bf16.msra.mxu0 %v1210
        %1230 = vmatprep.subr.bf16.mxu0 %v1209
        %1231 = vmatpush1.bf16.msra.mxu0 %v1208
        %1232 = vmatprep.subr.bf16.mxu0 %v1207
        %1233 = vmatpush1.bf16.msra.mxu0 %v1206
        %1234 = vmatprep.subr.bf16.mxu0 %v1205
        %1235 = vmatpush1.bf16.msra.mxu0 %v1204
        %1236 = vmatprep.subr.bf16.mxu0 %v1203
        %1237 = vmatpush1.bf16.msra.mxu0 %v1202
        %1238 = vmatprep.subr.bf16.mxu0 %v1201
        %1239 = vmatpush1.bf16.msra.mxu0 %v1200
        %1240 = vmatprep.subr.bf16.mxu0 %v1199
        %1241 = vmatpush1.bf16.msra.mxu0 %v1198
        %1242 = vmatprep.subr.bf16.mxu0 %v1197
        %1243 = vmatpush1.bf16.msra.mxu0 %v1196
        %1244 = vmatprep.subr.bf16.mxu0 0
        %1245 = vmatpush2.bf16.msra.mxu0 0
        %1246 = vmatprep.subr.bf16.mxu0 0
        %1247 = vmatpush2.bf16.msra.mxu0 0
        %1248 = vmatprep.subr.bf16.mxu0 0
        %1249 = vmatpush2.bf16.msra.mxu0 0
        %1250 = vmatprep.subr.bf16.mxu0 0
        %1251 = vmatpush2.bf16.msra.mxu0 0
        %1252 = vmatprep.subr.bf16.mxu0 0
        %1253 = vmatpush2.bf16.msra.mxu0 0
        %1254 = vmatprep.subr.bf16.mxu0 0
        %1255 = vmatpush2.bf16.msra.mxu0 0
        %1256 = vmatprep.subr.bf16.mxu0 0
        %1257 = vmatpush2.bf16.msra.mxu0 0
        %1258 = vmatprep.subr.bf16.mxu0 0
        %1259 = vmatpush2.bf16.msra.mxu0 0
        %1260 = vmatprep.mubr.bf16.mxu0 0
        %1261 = vmatmul.mubr.bf16.gmra.mxu0 %v1136
        %v1262 = vpop.f32.mrf.mxu0
        %v1263 = vadd.f32 %v1141, %v1262
        %v1264 = vpop.f32.mrf.mxu0
        %v1265 = vadd.f32 %v1145, %v1264
        %v1266 = vpop.f32.mrf.mxu0
        %v1267 = vpop.f32.mrf.mxu0
        %1268 = vdwg.mxu0
        %p1269 = scmp.eq.s32.totalorder %s30, 0
        // Predicated region
        $region81: #{forward.3} parent=71 // pred_check
          %p1270 = pneg %p1269
        $region82: #{forward.3} parent=71 // pred_check_branch
          %1272 = sbr.rel (%p1270) target = $region84
        $region83: #{forward.3} parent=71 // pred_region
          %1273 = vst [vmem:[%s655] sm:$0xff] %v1263
          %1274 = vst [vmem:[%s655 + $0x8] sm:$0xff] %v1265
        $region84: #{forward.3} parent=71 // pred_fallthru
          _
        %p1275 = scmp.eq.s32.totalorder %s30, 1
        // Predicated region
        $region85: #{forward.3} parent=71 // pred_check
          %p1276 = pneg %p1275
        $region86: #{forward.3} parent=71 // pred_check_branch
          %1278 = sbr.rel (%p1276) target = $region88
        $region87: #{forward.3} parent=71 // pred_region
          %v1279 = vxor.u32 %v1263, 2147483648
          %v1280 = vxor.u32 %v1265, 2147483648
          %v1281 = vmul.f32 %v1279, 1.442695
          %v1282 = vpow.pop %v1281
          %v1283 = vmul.f32 %v1280, 1.442695
          %v1284 = vpow.pop %v1283
          %v1285 = vadd.f32 %v1282, 1.0
          %v1286 = vadd.f32 %v1284, 1.0
          %v1287 = vrcp.pop %v1285
          %v1288 = vmul.f32 1.0, %v1287
          %v1289 = vrcp.pop %v1286
          %v1290 = vmul.f32 1.0, %v1289
          %1291 = vst [vmem:[%s655] sm:$0xff] %v1288
          %1292 = vst [vmem:[%s655 + $0x8] sm:$0xff] %v1290
        $region88: #{forward.3} parent=71 // pred_fallthru
          _
        %p1293 = scmp.lt.s32.totalorder %s30, 1
        %s1294 = scalar_select %p1293, %s30, 1
        %s1295 = smul.addr %s1294, 2
        %s1296 = smul.addr %s1295, 8
        %s1297 = scalar_lea.vmem %s13, %s1296
        // Predicated region
        $region89: #{forward.3} parent=71 // pred_check
          %p1298 = pneg %p381
        $region90: #{forward.3} parent=71 // pred_check_branch
          %1300 = sbr.rel (%p1298) target = $region92
        $region91: #{forward.3} parent=71 // pred_region
          _
        $region92: #{forward.3} parent=71 // pred_fallthru
          _
      $region72: #{forward.3} parent=5 // pred_fallthru
        _
      %p1301 = scmp.le.s32.totalorder 2, %s25
      // Predicated region
      $region93: #{forward.3} parent=5 // pred_check
        %p1302 = pneg %p1301
      $region94: #{forward.3} parent=5 // pred_check_branch
        %1304 = sbr.rel (%p1302) target = $region96
      $region95: #{forward.3} parent=5 // pred_region
        %s1305 = ssub.s32 %s25, 2
        // Predicated region
        $region97: #{forward.3} parent=95 // pred_check
          %p1306 = pneg %p387
        $region98: #{forward.3} parent=95 // pred_check_branch
          %1308 = sbr.rel (%p1306) target = $region100
        $region99: #{forward.3} parent=95 // pred_region
          %p1309 = scmp.lt.s32.totalorder %s31, 1
          %s1310 = scalar_select %p1309, %s31, 1
          %s1311 = smul.addr %s1310, 2
          %s1312 = smul.addr %s1311, 8
          %s1313 = scalar_lea.vmem %s13, %s1312
        $region100: #{forward.3} parent=95 // pred_fallthru
          _
      $region96: #{forward.3} parent=5 // pred_fallthru
        _
    $region6: #{forward.3} parent=1 // loop_footer
      %s29 = sadd.s32 1, %s25
    $region7: #{forward.3} parent=1 // loop_footer_branch
      %24 = sbr.rel target = $region3
    $region8: #{forward.3} parent=1 // loop_exit
      _
    %1314 = vsyncpa [#allocation3], 1
    %s1315 = scalar_lea.sflag [#allocation3], 1
    %1316 = vsyncpa %s1315, 1
    %1317 = vsyncpa [#allocation5], 1
    %s1318 = scalar_lea.sflag [#allocation5], 1
    %1319 = vsyncpa %s1318, 1

// kernel: forward.2
$region0: #{forward.2}
  #allocation0 [shape = 'u32[]', space=smem, size = 0x4, offset = 0x4, fixed_abs, tag = 'smem constant byte address 0x4 - core index']
  #allocation1 [shape = 'u32[144,128]{1,0:T(1,128)}', space=vmem, size = 0x12000, scoped, tag = 'internal scratch']
  %s0 = inlined_call_operand.vmem [shape: f32[8,256], index: 0, kind: input, shape index: {}]
  %s1 = inlined_call_operand.vmem [shape: f32[8,128], index: 1, kind: input, shape index: {}]
  %s2 = inlined_call_operand.hbm [shape: bf16[256,128], index: 2, kind: input, shape index: {}]
  %s3 = inlined_call_operand.vmem [shape: f32[1,128], index: 3, kind: input, shape index: {}]
  %s4 = inlined_call_operand.vmem [shape: f32[1,128], index: 4, kind: input, shape index: {}]
  %s5 = inlined_call_operand.vmem [shape: f32[1,128], index: 5, kind: input, shape index: {}]
  %s6 = inlined_call_operand.hbm [shape: bf16[128,128], index: 6, kind: input, shape index: {}]
  %s7 = inlined_call_operand.vmem [shape: f32[1,128], index: 7, kind: input, shape index: {}]
  %s8 = inlined_call_operand.vmem [shape: f32[1,128], index: 8, kind: input, shape index: {}]
  %s9 = inlined_call_operand.vmem [shape: f32[1,128], index: 9, kind: input, shape index: {}]
  %s10 = inlined_call_operand.hbm [shape: bf16[128,128], index: 10, kind: input, shape index: {}]
  %s11 = inlined_call_operand.vmem [shape: f32[1,128], index: 11, kind: input, shape index: {}]
  %s12 = inlined_call_operand.vmem [shape: f32[1,128], index: 12, kind: input, shape index: {}]
  %s13 = inlined_call_operand.vmem [shape: f32[1,128], index: 13, kind: input, shape index: {}]
  %s14 = inlined_call_operand.hbm [shape: bf16[128,256], index: 14, kind: input, shape index: {}]
  %s15 = inlined_call_operand.vmem [shape: f32[1,256], index: 15, kind: input, shape index: {}]
  %s16 = inlined_call_operand.hbm [shape: f32[8,128], index: 16, kind: output, shape index: {0}]
  %s17 = inlined_call_operand.hbm [shape: f32[8,128], index: 17, kind: output, shape index: {1}]
  %s18 = inlined_call_operand.vmem [shape: f32[8,128], index: 18, kind: output, shape index: {2}]
  %19 = xla_tuple %s16, %s17, %s18
  %s20 = sld [smem:[#allocation0]]
  $region106: #{forward.2} parent=0
    _
  %s22 = ssub.s32 1, %s20
  %s23 = scalar_select 0, %s22, %s20
  $region1: #{forward.2} parent=0
    #allocation2 [shape = 'u8[65536]{0}', space=vmem, size = 0x10000, scoped, tag = 'input window, operand 2, single buffered']
    #allocation3 [shape = 's32[1]{0}', space=sflag, size = 0x4, scoped, tag = 'scoped memory for forward.2']
    #allocation4 [shape = 's32[1]{0}', space=sflag, size = 0x4, scoped, tag = 'scoped memory for forward.2']
    #allocation5 [shape = 'u8[32768]{0}', space=vmem, size = 0x8000, scoped, tag = 'input window, operand 6, single buffered']
    #allocation6 [shape = 's32[1]{0}', space=sflag, size = 0x4, scoped, tag = 'scoped memory for forward.2']
    #allocation7 [shape = 'u8[32768]{0}', space=vmem, size = 0x8000, scoped, tag = 'input window, operand 10, single buffered']
    #allocation8 [shape = 'u8[65536]{0}', space=vmem, size = 0x10000, scoped, tag = 'input window, operand 14, single buffered']
    #allocation9 [shape = 's32[1]{0}', space=sflag, size = 0x4, scoped, tag = 'scoped memory for forward.2']
    #allocation10 [shape = 'u8[4096]{0}', space=vmem, size = 0x1000, scoped, tag = 'output window, operand 0, single buffered']
    #allocation11 [shape = 'u8[4096]{0}', space=vmem, size = 0x1000, scoped, tag = 'output window, operand 1, single buffered']
    #allocation12 [shape = 's32[1]{0}', space=sflag, size = 0x4, scoped, tag = 'scoped memory for forward.2']
    %24 = vsyncpa [#allocation3], 0
    %25 = vsyncpa [#allocation6], 0
    %26 = vsyncpa [#allocation9], 0
    %27 = vsyncpa [#allocation4], 0
    %28 = vsyncpa [#allocation12], 0
    // Predicated region
    $region2: #{forward.2} parent=1 // pred_check
      _
    $region3: #{forward.2} parent=1 // pred_check_branch
      %30 = sbr.rel (0) target = $region5
    $region4: #{forward.2} parent=1 // pred_region
      _
    $region5: #{forward.2} parent=1 // pred_fallthru
      _
    // Predicated region
    $region6: #{forward.2} parent=1 // pred_check
      _
    $region7: #{forward.2} parent=1 // pred_check_branch
      %32 = sbr.rel (0) target = $region9
    $region8: #{forward.2} parent=1 // pred_region
      _
    $region9: #{forward.2} parent=1 // pred_fallthru
      _
    // Predicated region
    $region10: #{forward.2} parent=1 // pred_check
      _
    $region11: #{forward.2} parent=1 // pred_check_branch
      %34 = sbr.rel (0) target = $region13
    $region12: #{forward.2} parent=1 // pred_region
      %s36 = ssub.s32 2048, 2048
      %37 = vsyncadd [#allocation3], %s36
      %s38 = sshll.u32 [#allocation2], 4
      %s39 = int_to_ptr.vmem [resolvable:$true] %s38
      %44 = dma.hbm_to_vmem [thread:$0]  %s2, 2048, %s39, [#allocation3], 64, 64, 4
    $region13: #{forward.2} parent=1 // pred_fallthru
      _
    // Predicated region
    $region14: #{forward.2} parent=1 // pred_check
      _
    $region15: #{forward.2} parent=1 // pred_check_branch
      %46 = sbr.rel (0) target = $region17
    $region16: #{forward.2} parent=1 // pred_region
      _
    $region17: #{forward.2} parent=1 // pred_fallthru
      _
    // Predicated region
    $region18: #{forward.2} parent=1 // pred_check
      _
    $region19: #{forward.2} parent=1 // pred_check_branch
      %48 = sbr.rel (0) target = $region21
    $region20: #{forward.2} parent=1 // pred_region
      _
    $region21: #{forward.2} parent=1 // pred_fallthru
      _
    // Predicated region
    $region22: #{forward.2} parent=1 // pred_check
      _
    $region23: #{forward.2} parent=1 // pred_check_branch
      %50 = sbr.rel (0) target = $region25
    $region24: #{forward.2} parent=1 // pred_region
      _
    $region25: #{forward.2} parent=1 // pred_fallthru
      _
    // Predicated region
    $region26: #{forward.2} parent=1 // pred_check
      _
    $region27: #{forward.2} parent=1 // pred_check_branch
      %52 = sbr.rel (0) target = $region29
    $region28: #{forward.2} parent=1 // pred_region
      %s54 = ssub.s32 1024, 1024
      %55 = vsyncadd [#allocation6], %s54
      %s56 = sshll.u32 [#allocation5], 4
      %s57 = int_to_ptr.vmem [resolvable:$true] %s56
      %62 = dma.hbm_to_vmem [thread:$0]  %s6, 1024, %s57, [#allocation6], 64, 64, 4
    $region29: #{forward.2} parent=1 // pred_fallthru
      _
    // Predicated region
    $region30: #{forward.2} parent=1 // pred_check
      _
    $region31: #{forward.2} parent=1 // pred_check_branch
      %64 = sbr.rel (0) target = $region33
    $region32: #{forward.2} parent=1 // pred_region
      _
    $region33: #{forward.2} parent=1 // pred_fallthru
      _
    // Predicated region
    $region34: #{forward.2} parent=1 // pred_check
      _
    $region35: #{forward.2} parent=1 // pred_check_branch
      %66 = sbr.rel (0) target = $region37
    $region36: #{forward.2} parent=1 // pred_region
      _
    $region37: #{forward.2} parent=1 // pred_fallthru
      _
    // Predicated region
    $region38: #{forward.2} parent=1 // pred_check
      _
    $region39: #{forward.2} parent=1 // pred_check_branch
      %68 = sbr.rel (0) target = $region41
    $region40: #{forward.2} parent=1 // pred_region
      _
    $region41: #{forward.2} parent=1 // pred_fallthru
      _
    // Predicated region
    $region42: #{forward.2} parent=1 // pred_check
      _
    $region43: #{forward.2} parent=1 // pred_check_branch
      %70 = sbr.rel (0) target = $region45
    $region44: #{forward.2} parent=1 // pred_region
      %s72 = ssub.s32 1024, 1024
      %73 = vsyncadd [#allocation6], %s72
      %s74 = sshll.u32 [#allocation7], 4
      %s75 = int_to_ptr.vmem [resolvable:$true] %s74
      %80 = dma.hbm_to_vmem [thread:$0]  %s10, 1024, %s75, [#allocation6], 64, 64, 4
    $region45: #{forward.2} parent=1 // pred_fallthru
      _
    // Predicated region
    $region46: #{forward.2} parent=1 // pred_check
      _
    $region47: #{forward.2} parent=1 // pred_check_branch
      %82 = sbr.rel (0) target = $region49
    $region48: #{forward.2} parent=1 // pred_region
      _
    $region49: #{forward.2} parent=1 // pred_fallthru
      _
    // Predicated region
    $region50: #{forward.2} parent=1 // pred_check
      _
    $region51: #{forward.2} parent=1 // pred_check_branch
      %84 = sbr.rel (0) target = $region53
    $region52: #{forward.2} parent=1 // pred_region
      _
    $region53: #{forward.2} parent=1 // pred_fallthru
      _
    // Predicated region
    $region54: #{forward.2} parent=1 // pred_check
      _
    $region55: #{forward.2} parent=1 // pred_check_branch
      %86 = sbr.rel (0) target = $region57
    $region56: #{forward.2} parent=1 // pred_region
      _
    $region57: #{forward.2} parent=1 // pred_fallthru
      _
    // Predicated region
    $region58: #{forward.2} parent=1 // pred_check
      _
    $region59: #{forward.2} parent=1 // pred_check_branch
      %88 = sbr.rel (0) target = $region61
    $region60: #{forward.2} parent=1 // pred_region
      %s90 = ssub.s32 2048, 2048
      %91 = vsyncadd [#allocation9], %s90
      %s92 = sshll.u32 [#allocation8], 4
      %s93 = int_to_ptr.vmem [resolvable:$true] %s92
      %98 = dma.hbm_to_vmem [thread:$0]  %s14, 2048, %s93, [#allocation9], 128, 128, 8
    $region61: #{forward.2} parent=1 // pred_fallthru
      _
    // Predicated region
    $region62: #{forward.2} parent=1 // pred_check
      _
    $region63: #{forward.2} parent=1 // pred_check_branch
      %100 = sbr.rel (0) target = $region65
    $region64: #{forward.2} parent=1 // pred_region
      _
    $region65: #{forward.2} parent=1 // pred_fallthru
      _
    // Predicated region
    $region66: #{forward.2} parent=1 // pred_check
      _
    $region67: #{forward.2} parent=1 // pred_check_branch
      %102 = sbr.rel (0) target = $region69
    $region68: #{forward.2} parent=1 // pred_region
      %103 = dma.done [#allocation3], 2048
    $region69: #{forward.2} parent=1 // pred_fallthru
      _
    // Predicated region
    $region70: #{forward.2} parent=1 // pred_check
      _
    $region71: #{forward.2} parent=1 // pred_check_branch
      %105 = sbr.rel (0) target = $region73
    $region72: #{forward.2} parent=1 // pred_region
      %106 = dma.done [#allocation6], 1024
    $region73: #{forward.2} parent=1 // pred_fallthru
      _
    // Predicated region
    $region74: #{forward.2} parent=1 // pred_check
      _
    $region75: #{forward.2} parent=1 // pred_check_branch
      %108 = sbr.rel (0) target = $region77
    $region76: #{forward.2} parent=1 // pred_region
      %109 = dma.done [#allocation6], 1024
    $region77: #{forward.2} parent=1 // pred_fallthru
      _
    // Predicated region
    $region78: #{forward.2} parent=1 // pred_check
      _
    $region79: #{forward.2} parent=1 // pred_check_branch
      %111 = sbr.rel (0) target = $region81
    $region80: #{forward.2} parent=1 // pred_region
      %112 = dma.done [#allocation9], 2048
    $region81: #{forward.2} parent=1 // pred_fallthru
      _
    %v114 = vld [vmem:[%s0] sm:$0xff]
    %v115 = vld [vmem:[%s0 + $0x8] sm:$0xff]
    %v116 = vld [vmem:[%s1] sm:$0xff]
    %v117 = vld [vmem:[#allocation2] sm:$0xf]
    %v118 = vld [vmem:[#allocation2 + $0x4] sm:$0xf]
    %v119 = vld [vmem:[#allocation2 + $0x8] sm:$0xf]
    %v120 = vld [vmem:[#allocation2 + $0xc] sm:$0xf]
    %v121 = vld [vmem:[#allocation2 + $0x10] sm:$0xf]
    %v122 = vld [vmem:[#allocation2 + $0x14] sm:$0xf]
    %v123 = vld [vmem:[#allocation2 + $0x18] sm:$0xf]
    %v124 = vld [vmem:[#allocation2 + $0x1c] sm:$0xf]
    %v125 = vld [vmem:[#allocation2 + $0x20] sm:$0xf]
    %v126 = vld [vmem:[#allocation2 + $0x24] sm:$0xf]
    %v127 = vld [vmem:[#allocation2 + $0x28] sm:$0xf]
    %v128 = vld [vmem:[#allocation2 + $0x2c] sm:$0xf]
    %v129 = vld [vmem:[#allocation2 + $0x30] sm:$0xf]
    %v130 = vld [vmem:[#allocation2 + $0x34] sm:$0xf]
    %v131 = vld [vmem:[#allocation2 + $0x38] sm:$0xf]
    %v132 = vld [vmem:[#allocation2 + $0x3c] sm:$0xf]
    %v133 = vld [vmem:[#allocation2 + $0x40] sm:$0xf]
    %v134 = vld [vmem:[#allocation2 + $0x44] sm:$0xf]
    %v135 = vld [vmem:[#allocation2 + $0x48] sm:$0xf]
    %v136 = vld [vmem:[#allocation2 + $0x4c] sm:$0xf]
    %v137 = vld [vmem:[#allocation2 + $0x50] sm:$0xf]
    %v138 = vld [vmem:[#allocation2 + $0x54] sm:$0xf]
    %v139 = vld [vmem:[#allocation2 + $0x58] sm:$0xf]
    %v140 = vld [vmem:[#allocation2 + $0x5c] sm:$0xf]
    %v141 = vld [vmem:[#allocation2 + $0x60] sm:$0xf]
    %v142 = vld [vmem:[#allocation2 + $0x64] sm:$0xf]
    %v143 = vld [vmem:[#allocation2 + $0x68] sm:$0xf]
    %v144 = vld [vmem:[#allocation2 + $0x6c] sm:$0xf]
    %v145 = vld [vmem:[#allocation2 + $0x70] sm:$0xf]
    %v146 = vld [vmem:[#allocation2 + $0x74] sm:$0xf]
    %v147 = vld [vmem:[#allocation2 + $0x78] sm:$0xf]
    %v148 = vld [vmem:[#allocation2 + $0x7c] sm:$0xf]
    %v149 = vld [vmem:[%s3] sm:$0x1]
    %v150 = vld [vmem:[%s4] sm:$0x1]
    %v151 = vld [vmem:[%s5] sm:$0x1]
    %v152 = vld [vmem:[#allocation5] sm:$0xf]
    %v153 = vld [vmem:[#allocation5 + $0x4] sm:$0xf]
    %v154 = vld [vmem:[#allocation5 + $0x8] sm:$0xf]
    %v155 = vld [vmem:[#allocation5 + $0xc] sm:$0xf]
    %v156 = vld [vmem:[#allocation5 + $0x10] sm:$0xf]
    %v157 = vld [vmem:[#allocation5 + $0x14] sm:$0xf]
    %v158 = vld [vmem:[#allocation5 + $0x18] sm:$0xf]
    %v159 = vld [vmem:[#allocation5 + $0x1c] sm:$0xf]
    %v160 = vld [vmem:[#allocation5 + $0x20] sm:$0xf]
    %v161 = vld [vmem:[#allocation5 + $0x24] sm:$0xf]
    %v162 = vld [vmem:[#allocation5 + $0x28] sm:$0xf]
    %v163 = vld [vmem:[#allocation5 + $0x2c] sm:$0xf]
    %v164 = vld [vmem:[#allocation5 + $0x30] sm:$0xf]
    %v165 = vld [vmem:[#allocation5 + $0x34] sm:$0xf]
    %v166 = vld [vmem:[#allocation5 + $0x38] sm:$0xf]
    %v167 = vld [vmem:[#allocation5 + $0x3c] sm:$0xf]
    %v168 = vld [vmem:[%s7] sm:$0x1]
    %v169 = vld [vmem:[%s8] sm:$0x1]
    %v170 = vld [vmem:[%s9] sm:$0x1]
    %v171 = vld [vmem:[#allocation7] sm:$0xf]
    %v172 = vld [vmem:[#allocation7 + $0x4] sm:$0xf]
    %v173 = vld [vmem:[#allocation7 + $0x8] sm:$0xf]
    %v174 = vld [vmem:[#allocation7 + $0xc] sm:$0xf]
    %v175 = vld [vmem:[#allocation7 + $0x10] sm:$0xf]
    %v176 = vld [vmem:[#allocation7 + $0x14] sm:$0xf]
    %v177 = vld [vmem:[#allocation7 + $0x18] sm:$0xf]
    %v178 = vld [vmem:[#allocation7 + $0x1c] sm:$0xf]
    %v179 = vld [vmem:[#allocation7 + $0x20] sm:$0xf]
    %v180 = vld [vmem:[#allocation7 + $0x24] sm:$0xf]
    %v181 = vld [vmem:[#allocation7 + $0x28] sm:$0xf]
    %v182 = vld [vmem:[#allocation7 + $0x2c] sm:$0xf]
    %v183 = vld [vmem:[#allocation7 + $0x30] sm:$0xf]
    %v184 = vld [vmem:[#allocation7 + $0x34] sm:$0xf]
    %v185 = vld [vmem:[#allocation7 + $0x38] sm:$0xf]
    %v186 = vld [vmem:[#allocation7 + $0x3c] sm:$0xf]
    %v187 = vld [vmem:[%s11] sm:$0x1]
    %v188 = vld [vmem:[%s12] sm:$0x1]
    %v189 = vld [vmem:[%s13] sm:$0x1]
    %v190 = vld [vmem:[#allocation8] sm:$0xff]
    %v191 = vld [vmem:[#allocation8 + $0x8] sm:$0xff]
    %v192 = vld [vmem:[#allocation8 + $0x10] sm:$0xff]
    %v193 = vld [vmem:[#allocation8 + $0x18] sm:$0xff]
    %v194 = vld [vmem:[#allocation8 + $0x20] sm:$0xff]
    %v195 = vld [vmem:[#allocation8 + $0x28] sm:$0xff]
    %v196 = vld [vmem:[#allocation8 + $0x30] sm:$0xff]
    %v197 = vld [vmem:[#allocation8 + $0x38] sm:$0xff]
    %v198 = vld [vmem:[#allocation8 + $0x40] sm:$0xff]
    %v199 = vld [vmem:[#allocation8 + $0x48] sm:$0xff]
    %v200 = vld [vmem:[#allocation8 + $0x50] sm:$0xff]
    %v201 = vld [vmem:[#allocation8 + $0x58] sm:$0xff]
    %v202 = vld [vmem:[#allocation8 + $0x60] sm:$0xff]
    %v203 = vld [vmem:[#allocation8 + $0x68] sm:$0xff]
    %v204 = vld [vmem:[#allocation8 + $0x70] sm:$0xff]
    %v205 = vld [vmem:[#allocation8 + $0x78] sm:$0xff]
    %v206 = vld [vmem:[%s15] sm:$0x3]
    %v207 = vpack.c.bf16 %v114, %v114
    %v208 = vpack.c.bf16 %v115, %v115
    %v210 = vlaneseq
    %v211 = vshrl.u32 %v210, 7
    %v212 = vsub.s32 0, %v211
    %v213 = vrot.slane %v149, %v212
    %v247 = vunpack.c.l.b16 %v117
    %v248 = vunpack.c.l.b16 %v118
    %v249 = vunpack.c.l.b16 %v119
    %v250 = vunpack.c.l.b16 %v120
    %v251 = vunpack.c.l.b16 %v121
    %v252 = vunpack.c.l.b16 %v122
    %v253 = vunpack.c.l.b16 %v123
    %v254 = vunpack.c.l.b16 %v124
    %v255 = vunpack.c.l.b16 %v125
    %v256 = vunpack.c.l.b16 %v126
    %v257 = vunpack.c.l.b16 %v127
    %v258 = vunpack.c.l.b16 %v128
    %v259 = vunpack.c.l.b16 %v129
    %v260 = vunpack.c.l.b16 %v130
    %v261 = vunpack.c.l.b16 %v131
    %v262 = vunpack.c.l.b16 %v132
    %v263 = vunpack.c.l.b16 %v133
    %v264 = vunpack.c.l.b16 %v134
    %v265 = vunpack.c.l.b16 %v135
    %v266 = vunpack.c.l.b16 %v136
    %v267 = vunpack.c.l.b16 %v137
    %v268 = vunpack.c.l.b16 %v138
    %v269 = vunpack.c.l.b16 %v139
    %v270 = vunpack.c.l.b16 %v140
    %v271 = vunpack.c.l.b16 %v141
    %v272 = vunpack.c.l.b16 %v142
    %v273 = vunpack.c.l.b16 %v143
    %v274 = vunpack.c.l.b16 %v144
    %v275 = vunpack.c.l.b16 %v145
    %v276 = vunpack.c.l.b16 %v146
    %v277 = vunpack.c.l.b16 %v147
    %v278 = vunpack.c.l.b16 %v148
    %v279 = vpack.c.b16 %v248, %v247
    %v280 = vpack.c.b16 %v250, %v249
    %v281 = vpack.c.b16 %v252, %v251
    %v282 = vpack.c.b16 %v254, %v253
    %v283 = vpack.c.b16 %v256, %v255
    %v284 = vpack.c.b16 %v258, %v257
    %v285 = vpack.c.b16 %v260, %v259
    %v286 = vpack.c.b16 %v262, %v261
    %v287 = vpack.c.b16 %v264, %v263
    %v288 = vpack.c.b16 %v266, %v265
    %v289 = vpack.c.b16 %v268, %v267
    %v290 = vpack.c.b16 %v270, %v269
    %v291 = vpack.c.b16 %v272, %v271
    %v292 = vpack.c.b16 %v274, %v273
    %v293 = vpack.c.b16 %v276, %v275
    %v294 = vpack.c.b16 %v278, %v277
    %311 = vmatprep.subr.bf16.mxu0 0
    %312 = vmatpush1.bf16.msra.mxu0 %v286
    %313 = vmatprep.subr.bf16.mxu0 0
    %314 = vmatpush1.bf16.msra.mxu0 %v285
    %315 = vmatprep.subr.bf16.mxu0 0
    %316 = vmatpush1.bf16.msra.mxu0 %v284
    %317 = vmatprep.subr.bf16.mxu0 0
    %318 = vmatpush1.bf16.msra.mxu0 %v283
    %319 = vmatprep.subr.bf16.mxu0 0
    %320 = vmatpush1.bf16.msra.mxu0 %v282
    %321 = vmatprep.subr.bf16.mxu0 0
    %322 = vmatpush1.bf16.msra.mxu0 %v281
    %323 = vmatprep.subr.bf16.mxu0 0
    %324 = vmatpush1.bf16.msra.mxu0 %v280
    %325 = vmatprep.subr.bf16.mxu0 0
    %326 = vmatpush1.bf16.msra.mxu0 %v279
    %327 = vmatprep.subr.bf16.mxu0 0
    %328 = vmatpush2.bf16.msra.mxu0 %v294
    %329 = vmatprep.subr.bf16.mxu0 0
    %330 = vmatpush2.bf16.msra.mxu0 %v293
    %331 = vmatprep.subr.bf16.mxu0 0
    %332 = vmatpush2.bf16.msra.mxu0 %v292
    %333 = vmatprep.subr.bf16.mxu0 0
    %334 = vmatpush2.bf16.msra.mxu0 %v291
    %335 = vmatprep.subr.bf16.mxu0 0
    %336 = vmatpush2.bf16.msra.mxu0 %v290
    %337 = vmatprep.subr.bf16.mxu0 0
    %338 = vmatpush2.bf16.msra.mxu0 %v289
    %339 = vmatprep.subr.bf16.mxu0 0
    %340 = vmatpush2.bf16.msra.mxu0 %v288
    %341 = vmatprep.subr.bf16.mxu0 0
    %342 = vmatpush2.bf16.msra.mxu0 %v287
    %343 = vmatprep.mubr.bf16.mxu0 %v208
    %344 = vmatmul.mubr.bf16.gmra.mxu0 %v207
    %v345 = vpop.f32.mrf.mxu0
    %v346 = vadd.f32 %v213, %v345
    %v347 = vpop.f32.mrf.mxu0
    %v348 = vpop.f32.mrf.mxu0
    %v349 = vpop.f32.mrf.mxu0
    %350 = vdwg.mxu0
    %v351 = vrot.slane %v346, 4
    %v352 = vadd.f32 %v346, %v351
    %v353 = vrot.slane %v352, 2
    %v354 = vadd.f32 %v352, %v353
    %v355 = vrot.slane %v354, 1
    %v356 = vadd.f32 %v354, %v355
    %v357 = vrcp.pop 8.0
    %v358 = vmul.f32 %v356, %v357
    %v359 = vsub.f32 %v346, %v358
    %v360 = vmul.f32 %v359, %v359
    %v361 = vrot.slane %v360, 4
    %v362 = vadd.f32 %v360, %v361
    %v363 = vrot.slane %v362, 2
    %v364 = vadd.f32 %v362, %v363
    %v365 = vrot.slane %v364, 1
    %v366 = vadd.f32 %v364, %v365
    %v367 = vmul.f32 %v366, %v357
    %v368 = vadd.f32 %v367, 1e-05
    %v369 = vrsqrt.pop %v368
    %v370 = vmul.f32 %v150, %v369
    %v371 = vmul.f32 %v358, %v370
    %v372 = vsub.f32 %v151, %v371
    %v374 = vlaneseq
    %v375 = vshrl.u32 %v374, 7
    %v376 = vsub.s32 0, %v375
    %v377 = vrot.slane %v370, %v376
    %v379 = vmul.f32 %v346, %v377
    %v381 = vlaneseq
    %v382 = vshrl.u32 %v381, 7
    %v383 = vsub.s32 0, %v382
    %v384 = vrot.slane %v372, %v383
    %v386 = vadd.f32 %v379, %v384
    %v387 = vand.u32 2147483647, %v386
    %v388 = vmul.f32 %v387, 0.70710677
    %v389 = vmul.f32 %v388, 0.3275911
    %v390 = vadd.f32 %v389, 1.0
    %v391 = vrcp.pop %v390
    %v392 = vmul.f32 1.0, %v391
    %v393 = vmul.f32 %v392, 1.0614054
    %v394 = vadd.f32 %v393, -1.4531521
    %v395 = vmul.f32 %v394, %v392
    %v396 = vadd.f32 %v395, 1.4214138
    %v397 = vmul.f32 %v396, %v392
    %v398 = vadd.f32 %v397, -0.28449672
    %v399 = vmul.f32 %v398, %v392
    %v400 = vadd.f32 %v399, 0.2548296
    %v401 = vmul.f32 %v400, %v392
    %v402 = vadd.f32 %v386, %v387
    %v403 = vmul.f32 %v402, 0.5
    %v404 = vmul.f32 %v387, 0.5
    %v405 = vsub.f32 0.0, %v388
    %v406 = vmul.f32 %v405, %v388
    %v407 = vmul.f32 %v406, 1.442695
    %v408 = vpow.pop %v407
    %v409 = vmul.f32 %v401, %v408
    %v410 = vmul.f32 %v404, %v409
    %v411 = vsub.f32 %v403, %v410
    %v412 = vpack.c.bf16 %v411, %v411
    %v414 = vlaneseq
    %v415 = vshrl.u32 %v414, 7
    %v416 = vsub.s32 0, %v415
    %v417 = vrot.slane %v168, %v416
    %v435 = vunpack.c.l.b16 %v152
    %v436 = vunpack.c.l.b16 %v153
    %v437 = vunpack.c.l.b16 %v154
    %v438 = vunpack.c.l.b16 %v155
    %v439 = vunpack.c.l.b16 %v156
    %v440 = vunpack.c.l.b16 %v157
    %v441 = vunpack.c.l.b16 %v158
    %v442 = vunpack.c.l.b16 %v159
    %v443 = vunpack.c.l.b16 %v160
    %v444 = vunpack.c.l.b16 %v161
    %v445 = vunpack.c.l.b16 %v162
    %v446 = vunpack.c.l.b16 %v163
    %v447 = vunpack.c.l.b16 %v164
    %v448 = vunpack.c.l.b16 %v165
    %v449 = vunpack.c.l.b16 %v166
    %v450 = vunpack.c.l.b16 %v167
    %v451 = vpack.c.b16 %v436, %v435
    %v452 = vpack.c.b16 %v438, %v437
    %v453 = vpack.c.b16 %v440, %v439
    %v454 = vpack.c.b16 %v442, %v441
    %v455 = vpack.c.b16 %v444, %v443
    %v456 = vpack.c.b16 %v446, %v445
    %v457 = vpack.c.b16 %v448, %v447
    %v458 = vpack.c.b16 %v450, %v449
    %467 = vmatprep.subr.bf16.mxu0 0
    %468 = vmatpush1.bf16.msra.mxu0 %v458
    %469 = vmatprep.subr.bf16.mxu0 0
    %470 = vmatpush1.bf16.msra.mxu0 %v457
    %471 = vmatprep.subr.bf16.mxu0 0
    %472 = vmatpush1.bf16.msra.mxu0 %v456
    %473 = vmatprep.subr.bf16.mxu0 0
    %474 = vmatpush1.bf16.msra.mxu0 %v455
    %475 = vmatprep.subr.bf16.mxu0 0
    %476 = vmatpush1.bf16.msra.mxu0 %v454
    %477 = vmatprep.subr.bf16.mxu0 0
    %478 = vmatpush1.bf16.msra.mxu0 %v453
    %479 = vmatprep.subr.bf16.mxu0 0
    %480 = vmatpush1.bf16.msra.mxu0 %v452
    %481 = vmatprep.subr.bf16.mxu0 0
    %482 = vmatpush1.bf16.msra.mxu0 %v451
    %483 = vmatprep.subr.bf16.mxu0 0
    %484 = vmatpush2.bf16.msra.mxu0 0
    %485 = vmatprep.subr.bf16.mxu0 0
    %486 = vmatpush2.bf16.msra.mxu0 0
    %487 = vmatprep.subr.bf16.mxu0 0
    %488 = vmatpush2.bf16.msra.mxu0 0
    %489 = vmatprep.subr.bf16.mxu0 0
    %490 = vmatpush2.bf16.msra.mxu0 0
    %491 = vmatprep.subr.bf16.mxu0 0
    %492 = vmatpush2.bf16.msra.mxu0 0
    %493 = vmatprep.subr.bf16.mxu0 0
    %494 = vmatpush2.bf16.msra.mxu0 0
    %495 = vmatprep.subr.bf16.mxu0 0
    %496 = vmatpush2.bf16.msra.mxu0 0
    %497 = vmatprep.subr.bf16.mxu0 0
    %498 = vmatpush2.bf16.msra.mxu0 0
    %499 = vmatprep.mubr.bf16.mxu0 0
    %500 = vmatmul.mubr.bf16.gmra.mxu0 %v412
    %v501 = vpop.f32.mrf.mxu0
    %v502 = vadd.f32 %v417, %v501
    %v503 = vpop.f32.mrf.mxu0
    %v504 = vpop.f32.mrf.mxu0
    %v505 = vpop.f32.mrf.mxu0
    %506 = vdwg.mxu0
    %v507 = vrot.slane %v502, 4
    %v508 = vadd.f32 %v502, %v507
    %v509 = vrot.slane %v508, 2
    %v510 = vadd.f32 %v508, %v509
    %v511 = vrot.slane %v510, 1
    %v512 = vadd.f32 %v510, %v511
    %v513 = vmul.f32 %v512, %v357
    %v514 = vsub.f32 %v502, %v513
    %v515 = vmul.f32 %v514, %v514
    %v516 = vrot.slane %v515, 4
    %v517 = vadd.f32 %v515, %v516
    %v518 = vrot.slane %v517, 2
    %v519 = vadd.f32 %v517, %v518
    %v520 = vrot.slane %v519, 1
    %v521 = vadd.f32 %v519, %v520
    %v522 = vmul.f32 %v521, %v357
    %v523 = vadd.f32 %v522, 1e-05
    %v524 = vrsqrt.pop %v523
    %v525 = vmul.f32 %v169, %v524
    %v526 = vmul.f32 %v513, %v525
    %v527 = vsub.f32 %v170, %v526
    %v529 = vlaneseq
    %v530 = vshrl.u32 %v529, 7
    %v531 = vsub.s32 0, %v530
    %v532 = vrot.slane %v525, %v531
    %v534 = vmul.f32 %v502, %v532
    %v536 = vlaneseq
    %v537 = vshrl.u32 %v536, 7
    %v538 = vsub.s32 0, %v537
    %v539 = vrot.slane %v527, %v538
    %v541 = vadd.f32 %v534, %v539
    %v542 = vand.u32 2147483647, %v541
    %v543 = vmul.f32 %v542, 0.70710677
    %v544 = vmul.f32 %v543, 0.3275911
    %v545 = vadd.f32 %v544, 1.0
    %v546 = vrcp.pop %v545
    %v547 = vmul.f32 1.0, %v546
    %v548 = vmul.f32 %v547, 1.0614054
    %v549 = vadd.f32 %v548, -1.4531521
    %v550 = vmul.f32 %v549, %v547
    %v551 = vadd.f32 %v550, 1.4214138
    %v552 = vmul.f32 %v551, %v547
    %v553 = vadd.f32 %v552, -0.28449672
    %v554 = vmul.f32 %v553, %v547
    %v555 = vadd.f32 %v554, 0.2548296
    %v556 = vmul.f32 %v555, %v547
    %v557 = vadd.f32 %v541, %v542
    %v558 = vmul.f32 %v557, 0.5
    %v559 = vmul.f32 %v542, 0.5
    %v560 = vsub.f32 0.0, %v543
    %v561 = vmul.f32 %v560, %v543
    %v562 = vmul.f32 %v561, 1.442695
    %v563 = vpow.pop %v562
    %v564 = vmul.f32 %v556, %v563
    %v565 = vmul.f32 %v559, %v564
    %v566 = vsub.f32 %v558, %v565
    %v567 = vpack.c.bf16 %v566, %v566
    %v569 = vlaneseq
    %v570 = vshrl.u32 %v569, 7
    %v571 = vsub.s32 0, %v570
    %v572 = vrot.slane %v187, %v571
    %v590 = vunpack.c.l.b16 %v171
    %v591 = vunpack.c.l.b16 %v172
    %v592 = vunpack.c.l.b16 %v173
    %v593 = vunpack.c.l.b16 %v174
    %v594 = vunpack.c.l.b16 %v175
    %v595 = vunpack.c.l.b16 %v176
    %v596 = vunpack.c.l.b16 %v177
    %v597 = vunpack.c.l.b16 %v178
    %v598 = vunpack.c.l.b16 %v179
    %v599 = vunpack.c.l.b16 %v180
    %v600 = vunpack.c.l.b16 %v181
    %v601 = vunpack.c.l.b16 %v182
    %v602 = vunpack.c.l.b16 %v183
    %v603 = vunpack.c.l.b16 %v184
    %v604 = vunpack.c.l.b16 %v185
    %v605 = vunpack.c.l.b16 %v186
    %v606 = vpack.c.b16 %v591, %v590
    %v607 = vpack.c.b16 %v593, %v592
    %v608 = vpack.c.b16 %v595, %v594
    %v609 = vpack.c.b16 %v597, %v596
    %v610 = vpack.c.b16 %v599, %v598
    %v611 = vpack.c.b16 %v601, %v600
    %v612 = vpack.c.b16 %v603, %v602
    %v613 = vpack.c.b16 %v605, %v604
    %622 = vmatprep.subr.bf16.mxu0 0
    %623 = vmatpush1.bf16.msra.mxu0 %v613
    %624 = vmatprep.subr.bf16.mxu0 0
    %625 = vmatpush1.bf16.msra.mxu0 %v612
    %626 = vmatprep.subr.bf16.mxu0 0
    %627 = vmatpush1.bf16.msra.mxu0 %v611
    %628 = vmatprep.subr.bf16.mxu0 0
    %629 = vmatpush1.bf16.msra.mxu0 %v610
    %630 = vmatprep.subr.bf16.mxu0 0
    %631 = vmatpush1.bf16.msra.mxu0 %v609
    %632 = vmatprep.subr.bf16.mxu0 0
    %633 = vmatpush1.bf16.msra.mxu0 %v608
    %634 = vmatprep.subr.bf16.mxu0 0
    %635 = vmatpush1.bf16.msra.mxu0 %v607
    %636 = vmatprep.subr.bf16.mxu0 0
    %637 = vmatpush1.bf16.msra.mxu0 %v606
    %638 = vmatprep.subr.bf16.mxu0 0
    %639 = vmatpush2.bf16.msra.mxu0 0
    %640 = vmatprep.subr.bf16.mxu0 0
    %641 = vmatpush2.bf16.msra.mxu0 0
    %642 = vmatprep.subr.bf16.mxu0 0
    %643 = vmatpush2.bf16.msra.mxu0 0
    %644 = vmatprep.subr.bf16.mxu0 0
    %645 = vmatpush2.bf16.msra.mxu0 0
    %646 = vmatprep.subr.bf16.mxu0 0
    %647 = vmatpush2.bf16.msra.mxu0 0
    %648 = vmatprep.subr.bf16.mxu0 0
    %649 = vmatpush2.bf16.msra.mxu0 0
    %650 = vmatprep.subr.bf16.mxu0 0
    %651 = vmatpush2.bf16.msra.mxu0 0
    %652 = vmatprep.subr.bf16.mxu0 0
    %653 = vmatpush2.bf16.msra.mxu0 0
    %654 = vmatprep.mubr.bf16.mxu0 0
    %655 = vmatmul.mubr.bf16.gmra.mxu0 %v567
    %v656 = vpop.f32.mrf.mxu0
    %v657 = vadd.f32 %v572, %v656
    %v658 = vpop.f32.mrf.mxu0
    %v659 = vpop.f32.mrf.mxu0
    %v660 = vpop.f32.mrf.mxu0
    %661 = vdwg.mxu0
    %v662 = vrot.slane %v657, 4
    %v663 = vadd.f32 %v657, %v662
    %v664 = vrot.slane %v663, 2
    %v665 = vadd.f32 %v663, %v664
    %v666 = vrot.slane %v665, 1
    %v667 = vadd.f32 %v665, %v666
    %v668 = vmul.f32 %v667, %v357
    %v669 = vsub.f32 %v657, %v668
    %v670 = vmul.f32 %v669, %v669
    %v671 = vrot.slane %v670, 4
    %v672 = vadd.f32 %v670, %v671
    %v673 = vrot.slane %v672, 2
    %v674 = vadd.f32 %v672, %v673
    %v675 = vrot.slane %v674, 1
    %v676 = vadd.f32 %v674, %v675
    %v677 = vmul.f32 %v676, %v357
    %v678 = vadd.f32 %v677, 1e-05
    %v679 = vrsqrt.pop %v678
    %v680 = vmul.f32 %v188, %v679
    %v681 = vmul.f32 %v668, %v680
    %v682 = vsub.f32 %v189, %v681
    %v684 = vlaneseq
    %v685 = vshrl.u32 %v684, 7
    %v686 = vsub.s32 0, %v685
    %v687 = vrot.slane %v680, %v686
    %v689 = vmul.f32 %v657, %v687
    %v691 = vlaneseq
    %v692 = vshrl.u32 %v691, 7
    %v693 = vsub.s32 0, %v692
    %v694 = vrot.slane %v682, %v693
    %v696 = vadd.f32 %v689, %v694
    %v697 = vand.u32 2147483647, %v696
    %v698 = vmul.f32 %v697, 0.70710677
    %v699 = vmul.f32 %v698, 0.3275911
    %v700 = vadd.f32 %v699, 1.0
    %v701 = vrcp.pop %v700
    %v702 = vmul.f32 1.0, %v701
    %v703 = vmul.f32 %v702, 1.0614054
    %v704 = vadd.f32 %v703, -1.4531521
    %v705 = vmul.f32 %v704, %v702
    %v706 = vadd.f32 %v705, 1.4214138
    %v707 = vmul.f32 %v706, %v702
    %v708 = vadd.f32 %v707, -0.28449672
    %v709 = vmul.f32 %v708, %v702
    %v710 = vadd.f32 %v709, 0.2548296
    %v711 = vmul.f32 %v710, %v702
    %v712 = vadd.f32 %v696, %v697
    %v713 = vmul.f32 %v712, 0.5
    %v714 = vmul.f32 %v697, 0.5
    %v715 = vsub.f32 0.0, %v698
    %v716 = vmul.f32 %v715, %v698
    %v717 = vmul.f32 %v716, 1.442695
    %v718 = vpow.pop %v717
    %v719 = vmul.f32 %v711, %v718
    %v720 = vmul.f32 %v714, %v719
    %v721 = vsub.f32 %v713, %v720
    %v722 = vpack.c.bf16 %v721, %v721
    %v724 = vlaneseq
    %v725 = vshrl.u32 %v724, 7
    %v726 = vsub.s32 0, %v725
    %v727 = vrot.slane %v206, %v726
    %v728 = vlaneseq
    %v729 = vshrl.u32 %v728, 7
    %v730 = vsub.s32 1, %v729
    %v731 = vrot.slane %v206, %v730
    %v750 = vunpack.c.l.b16 %v190
    %v751 = vunpack.c.h.b16 %v190
    %v752 = vunpack.c.l.b16 %v191
    %v753 = vunpack.c.h.b16 %v191
    %v754 = vunpack.c.l.b16 %v192
    %v755 = vunpack.c.h.b16 %v192
    %v756 = vunpack.c.l.b16 %v193
    %v757 = vunpack.c.h.b16 %v193
    %v758 = vunpack.c.l.b16 %v194
    %v759 = vunpack.c.h.b16 %v194
    %v760 = vunpack.c.l.b16 %v195
    %v761 = vunpack.c.h.b16 %v195
    %v762 = vunpack.c.l.b16 %v196
    %v763 = vunpack.c.h.b16 %v196
    %v764 = vunpack.c.l.b16 %v197
    %v765 = vunpack.c.h.b16 %v197
    %v766 = vunpack.c.l.b16 %v198
    %v767 = vunpack.c.h.b16 %v198
    %v768 = vunpack.c.l.b16 %v199
    %v769 = vunpack.c.h.b16 %v199
    %v770 = vunpack.c.l.b16 %v200
    %v771 = vunpack.c.h.b16 %v200
    %v772 = vunpack.c.l.b16 %v201
    %v773 = vunpack.c.h.b16 %v201
    %v774 = vunpack.c.l.b16 %v202
    %v775 = vunpack.c.h.b16 %v202
    %v776 = vunpack.c.l.b16 %v203
    %v777 = vunpack.c.h.b16 %v203
    %v778 = vunpack.c.l.b16 %v204
    %v779 = vunpack.c.h.b16 %v204
    %v780 = vunpack.c.l.b16 %v205
    %v781 = vunpack.c.h.b16 %v205
    %v782 = vpack.c.b16 %v752, %v750
    %v783 = vpack.c.b16 %v753, %v751
    %v784 = vpack.c.b16 %v756, %v754
    %v785 = vpack.c.b16 %v757, %v755
    %v786 = vpack.c.b16 %v760, %v758
    %v787 = vpack.c.b16 %v761, %v759
    %v788 = vpack.c.b16 %v764, %v762
    %v789 = vpack.c.b16 %v765, %v763
    %v790 = vpack.c.b16 %v768, %v766
    %v791 = vpack.c.b16 %v769, %v767
    %v792 = vpack.c.b16 %v772, %v770
    %v793 = vpack.c.b16 %v773, %v771
    %v794 = vpack.c.b16 %v776, %v774
    %v795 = vpack.c.b16 %v777, %v775
    %v796 = vpack.c.b16 %v780, %v778
    %v797 = vpack.c.b16 %v781, %v779
    %814 = vmatprep.subr.bf16.mxu0 %v797
    %815 = vmatpush1.bf16.msra.mxu0 %v796
    %816 = vmatprep.subr.bf16.mxu0 %v795
    %817 = vmatpush1.bf16.msra.mxu0 %v794
    %818 = vmatprep.subr.bf16.mxu0 %v793
    %819 = vmatpush1.bf16.msra.mxu0 %v792
    %820 = vmatprep.subr.bf16.mxu0 %v791
    %821 = vmatpush1.bf16.msra.mxu0 %v790
    %822 = vmatprep.subr.bf16.mxu0 %v789
    %823 = vmatpush1.bf16.msra.mxu0 %v788
    %824 = vmatprep.subr.bf16.mxu0 %v787
    %825 = vmatpush1.bf16.msra.mxu0 %v786
    %826 = vmatprep.subr.bf16.mxu0 %v785
    %827 = vmatpush1.bf16.msra.mxu0 %v784
    %828 = vmatprep.subr.bf16.mxu0 %v783
    %829 = vmatpush1.bf16.msra.mxu0 %v782
    %830 = vmatprep.subr.bf16.mxu0 0
    %831 = vmatpush2.bf16.msra.mxu0 0
    %832 = vmatprep.subr.bf16.mxu0 0
    %833 = vmatpush2.bf16.msra.mxu0 0
    %834 = vmatprep.subr.bf16.mxu0 0
    %835 = vmatpush2.bf16.msra.mxu0 0
    %836 = vmatprep.subr.bf16.mxu0 0
    %837 = vmatpush2.bf16.msra.mxu0 0
    %838 = vmatprep.subr.bf16.mxu0 0
    %839 = vmatpush2.bf16.msra.mxu0 0
    %840 = vmatprep.subr.bf16.mxu0 0
    %841 = vmatpush2.bf16.msra.mxu0 0
    %842 = vmatprep.subr.bf16.mxu0 0
    %843 = vmatpush2.bf16.msra.mxu0 0
    %844 = vmatprep.subr.bf16.mxu0 0
    %845 = vmatpush2.bf16.msra.mxu0 0
    %846 = vmatprep.mubr.bf16.mxu0 0
    %847 = vmatmul.mubr.bf16.gmra.mxu0 %v722
    %v848 = vpop.f32.mrf.mxu0
    %v849 = vadd.f32 %v727, %v848
    %v850 = vpop.f32.mrf.mxu0
    %v851 = vadd.f32 %v731, %v850
    %v852 = vpop.f32.mrf.mxu0
    %v853 = vpop.f32.mrf.mxu0
    %854 = vdwg.mxu0
    %v855 = vmin.f32 %v851, 15.0
    %v856 = vmul.f32 %v855, 0.5
    %v857 = vmul.f32 %v856, 1.442695
    %v858 = vpow.pop %v857
    %v859 = vmul.f32 %v116, %v858
    %v860 = vadd.f32 %v859, %v849
    %861 = vst [vmem:[#allocation10] sm:$0xff] %v849
    %862 = vst [vmem:[#allocation11] sm:$0xff] %v855
    %863 = vst [vmem:[%s18] sm:$0xff] %v860
    // Predicated region
    $region82: #{forward.2} parent=1 // pred_check
      _
    $region83: #{forward.2} parent=1 // pred_check_branch
      %865 = sbr.rel (0) target = $region85
    $region84: #{forward.2} parent=1 // pred_region
      %s867 = ssub.s32 128, 128
      %868 = vsyncadd [#allocation4], %s867
      %s870 = sshll.u32 [#allocation10], 4
      %s871 = int_to_ptr.vmem [resolvable:$true] %s870
      %873 = dma.vmem_to_hbm [thread:$0]  %s871, 128, %s16, [#allocation4]
    $region85: #{forward.2} parent=1 // pred_fallthru
      _
    // Predicated region
    $region86: #{forward.2} parent=1 // pred_check
      _
    $region87: #{forward.2} parent=1 // pred_check_branch
      %875 = sbr.rel (0) target = $region89
    $region88: #{forward.2} parent=1 // pred_region
      %s877 = ssub.s32 128, 128
      %878 = vsyncadd [#allocation12], %s877
      %s880 = sshll.u32 [#allocation11], 4
      %s881 = int_to_ptr.vmem [resolvable:$true] %s880
      %883 = dma.vmem_to_hbm [thread:$0]  %s881, 128, %s17, [#allocation12]
    $region89: #{forward.2} parent=1 // pred_fallthru
      _
    // Predicated region
    $region90: #{forward.2} parent=1 // pred_check
      _
    $region91: #{forward.2} parent=1 // pred_check_branch
      %885 = sbr.rel (0) target = $region93
    $region92: #{forward.2} parent=1 // pred_region
      _
    $region93: #{forward.2} parent=1 // pred_fallthru
      _
    // Predicated region
    $region94: #{forward.2} parent=1 // pred_check
      _
    $region95: #{forward.2} parent=1 // pred_check_branch
      %887 = sbr.rel (0) target = $region97
    $region96: #{forward.2} parent=1 // pred_region
      %888 = dma.done [#allocation4], 128
    $region97: #{forward.2} parent=1 // pred_fallthru
      _
    // Predicated region
    $region98: #{forward.2} parent=1 // pred_check
      _
    $region99: #{forward.2} parent=1 // pred_check_branch
      %890 = sbr.rel (0) target = $region101
    $region100: #{forward.2} parent=1 // pred_region
      %891 = dma.done [#allocation12], 128
    $region101: #{forward.2} parent=1 // pred_fallthru
      _
    // Predicated region
    $region102: #{forward.2} parent=1 // pred_check
      _
    $region103: #{forward.2} parent=1 // pred_check_branch
      %893 = sbr.rel (0) target = $region105
    $region104: #{forward.2} parent=1 // pred_region
      _
    $region105: #{forward.2} parent=1 // pred_fallthru
      _
    %894 = vsyncpa [#allocation3], 1
    %895 = vsyncpa [#allocation6], 1
    %896 = vsyncpa [#allocation9], 1
    %897 = vsyncpa [#allocation4], 1
    %898 = vsyncpa [#allocation12], 1

</llo_original>
